<compile_context>
chip_gen: v7x
topology: tpu7x:2x2x1
jax: 0.10.0
libtpu: 0.0.40
codegen_flags: <defaults>
</compile_context>

<pallas_src>
import functools

import jax
import jax.numpy as jnp
from jax.experimental import pallas as pl
from jax.experimental.pallas import tpu as pltpu


# ----------------------------- Pallas kernel --------------------------------
def _embed_kernel(ids_ref, seed_ref, emb_hbm, pe_ref, out_ref,
                  gather_buf, gather_sems, *, dropout_p, train, ts):
    # ids_ref  : SMEM (B, S) int32   (scalar prefetch)
    # seed_ref : SMEM (1,)   int32   (scalar prefetch)
    # emb_hbm  : HBM  (V, D) f32     (memory_space=pl.ANY, gathered manually)
    # pe_ref   : VMEM (ts, D) f32    (positional-encoding tile)
    # out_ref  : VMEM (1, ts, D) f32
    # gather_buf : VMEM (ts, D) scratch, gather destination
    # gather_sems: DMA semaphores, one per gathered row
    b = pl.program_id(0)
    st = pl.program_id(1)
    s0 = st * ts

    # Gather the ts embedding rows for this tile: issue every row DMA first so
    # all of them are in flight, then wait.  Row index comes from SMEM ids.
    copies = []
    for i in range(ts):                                   # ts is static
        tok = ids_ref[b, s0 + i]                          # dynamic scalar id
        cp = pltpu.make_async_copy(
            emb_hbm.at[pl.ds(tok, 1), :],                 # (1, D) row in HBM
            gather_buf.at[pl.ds(i, 1), :],                # (1, D) row in VMEM
            gather_sems.at[i])
        cp.start()
        copies.append(cp)
    for cp in copies:
        cp.wait()
    # TODO(synk): cross-tile double-buffering of gather_buf (prefetch the next
    # tile's rows while this tile computes) would hide the gather latency
    # further; single-buffered here for simplicity.

    tile = gather_buf[...].astype(jnp.float32) + pe_ref[...]   # (ts, D)

    if train and dropout_p > 0.0:
        # Same keep-prob (1-p) / scale 1/(1-p) semantics as torch.nn.Dropout;
        # RNG stream intentionally differs.
        pltpu.prng_seed(seed_ref[0] + b * pl.num_programs(1) + st)
        bits = pltpu.bitcast(pltpu.prng_random_bits(tile.shape), jnp.uint32)
        thresh = jnp.uint32(min(int(round(dropout_p * (2.0 ** 32))), 2 ** 32 - 1))
        keep = bits >= thresh                             # P(keep) = 1 - p
        tile = jnp.where(keep, tile * (1.0 / (1.0 - dropout_p)),
                         jnp.zeros_like(tile))

    # Dense (ts, D) store.  TODO(synk): emit bf16 here if the consumer accepts
    # it (halves the HBM write traffic); kept f32 to match the PyTorch module.
    out_ref[0] = tile.astype(out_ref.dtype)


def _pick_seq_tile(S):
    """Largest 8-multiple tile that divides S (falls back to full S)."""
    for cand in (256, 128, 64, 32, 16, 8):
        if S % cand == 0:
            return cand
    return S


def sentence_embedding_forward(token_ids, emb_table, pe, *,
                               dropout_p=0.1, train=False, seed=0,
                               seq_tile=None):
    """Pallas-backed forward:  out[b, s] = dropout(emb[ids[b, s]] + pe[s])."""
    B, S = token_ids.shape
    V, D = emb_table.shape
    assert pe.shape == (S, D)

    ts = seq_tile if seq_tile is not None else _pick_seq_tile(S)
    assert S % ts == 0, "sequence length must be divisible by the tile size"

    token_ids = token_ids.astype(jnp.int32)
    seed_arr = jnp.array([seed], dtype=jnp.int32)

    kernel = functools.partial(_embed_kernel, dropout_p=float(dropout_p),
                               train=bool(train), ts=ts)

    grid_spec = pltpu.PrefetchScalarGridSpec(
        num_scalar_prefetch=2,                # token ids + seed live in SMEM
        grid=(B, S // ts),
        in_specs=[
            # embedding table stays in HBM; rows are gathered by manual DMA
            pl.BlockSpec(memory_space=pl.ANY),
            # positional-encoding tile for this sequence tile (re-used over B)
            pl.BlockSpec((ts, D), lambda b, st, ids, seed: (st, 0)),
        ],
        out_specs=pl.BlockSpec((1, ts, D), lambda b, st, ids, seed: (b, st, 0)),
        scratch_shapes=[
            pltpu.VMEM((ts, D), emb_table.dtype),     # gather destination
            pltpu.SemaphoreType.DMA((ts,)),           # one sem per gathered row
        ],
    )

    return pl.pallas_call(
        kernel,
        out_shape=jax.ShapeDtypeStruct((B, S, D), jnp.float32),
        grid_spec=grid_spec,
        compiler_params=pltpu.CompilerParams(
            dimension_semantics=("parallel", "parallel")),
    )(token_ids, seed_arr, emb_table, pe)


# ------------------------------ JAX glue -------------------------------------
def positional_encoding(max_sequence_length, d_model):
    """Matches PositionalEncoding.forward() (interleaved sin/cos)."""
    even_i = jnp.arange(0, d_model, 2, dtype=jnp.float32)
    denominator = jnp.power(10000.0, even_i / d_model)
    position = jnp.arange(max_sequence_length, dtype=jnp.float32).reshape(-1, 1)
    even_pe = jnp.sin(position / denominator)
    odd_pe = jnp.cos(position / denominator)
    stacked = jnp.stack([even_pe, odd_pe], axis=2)
    return stacked.reshape(max_sequence_length, d_model)


START_TOKEN = 'START_TOKEN'
END_TOKEN = 'END_TOKEN'
PADDING_TOKEN = 'PADDING_TOKEN'


def build_vocab(sentences):
    words = sorted({w for s in sentences for w in s.split()})
    vocab = words + [START_TOKEN, END_TOKEN, PADDING_TOKEN]
    return {tok: i for i, tok in enumerate(vocab)}


def batch_tokenize(batch, language_to_index, max_sequence_length,
                   start_token=True, end_token=True):
    """Host-side Python glue, mirrors SentenceEmbedding.batch_tokenize."""
    rows = []
    for sentence in batch:
        ids = [language_to_index[tok] for tok in sentence.split()]
        if start_token:
            ids.insert(0, language_to_index[START_TOKEN])
        if end_token:
            ids.append(language_to_index[END_TOKEN])
        while len(ids) < max_sequence_length:
            ids.append(language_to_index[PADDING_TOKEN])
        rows.append(ids[:max_sequence_length])
    return jnp.array(rows, dtype=jnp.int32)


# --------------------------------- main ---------------------------------------
if __name__ == "__main__":
    # Small shapes consistent with the module's forward.
    max_sequence_length = 16
    d_model = 128

    sentences = ["hello world from pallas", "tiny tpu kernel test"]
    language_to_index = build_vocab(sentences)
    vocab_size = len(language_to_index)

    # Deterministic parameter init (nn.Embedding default: N(0, 1)).
    key = jax.random.PRNGKey(0)
    emb_table = jax.random.normal(key, (vocab_size, d_model), dtype=jnp.float32)

    token_ids = batch_tokenize(sentences, language_to_index,
                               max_sequence_length,
                               start_token=True, end_token=True)
    pe = positional_encoding(max_sequence_length, d_model)

    # train=False -> dropout is identity (eval-mode semantics), deterministic.
    out = sentence_embedding_forward(token_ids, emb_table, pe,
                                     dropout_p=0.1, train=False, seed=0)
    out = jax.block_until_ready(out)

    # Sanity check against a pure-JAX reference (eval mode).
    ref = emb_table[token_ids] + pe[None, :, :]
    assert out.shape == (len(sentences), max_sequence_length, d_model)
    assert jnp.allclose(out, ref, atol=1e-6), "mismatch vs reference"

    print("KERNEL_OK")
</pallas_src>

<mosaic_0001>
module attributes {stable_mosaic.version = 11 : i64} {
  func.func @_embed_kernel(%arg0: i32, %arg1: i32, %arg2: memref<2x16xi32, #tpu.memory_space<smem>>, %arg3: memref<1xi32, #tpu.memory_space<smem>>, %arg4: memref<11x128xf32, #tpu.memory_space<any>>, %arg5: memref<16x128xf32, #tpu.memory_space<vmem>>, %arg6: memref<1x16x128xf32, #tpu.memory_space<vmem>>, %arg7: memref<16x128xf32, #tpu.memory_space<vmem>>, %arg8: memref<16x!tpu.dma_semaphore, #tpu.memory_space<semaphore_mem>>) attributes {dimension_semantics = [#tpu.dimension_semantics<parallel>, #tpu.dimension_semantics<parallel>], iteration_bounds = array<i64: 2, 1>, scalar_prefetch = 2 : i64, scratch_operands = 2 : i64, tpu.core_type = #tpu.core_type<tc>, window_params = [{}, {transform_indices = @transform_1, window_bounds = array<i64: 16, 128>}, {transform_indices = @transform_2, window_bounds = array<i64: 1, 16, 128>}]} {
    %c16_i32 = arith.constant 16 : i32
    %0 = arith.muli %arg1, %c16_i32 : i32
    %c0_i32 = arith.constant 0 : i32
    %1 = arith.addi %0, %c0_i32 : i32
    %2 = arith.index_cast %arg0 : i32 to index
    %3 = arith.index_cast %1 : i32 to index
    %4 = memref.load %arg2[%2, %3] : memref<2x16xi32, #tpu.memory_space<smem>>
    %c0_i32_0 = arith.constant 0 : i32
    %c0_i32_1 = arith.constant 0 : i32
    %5 = tpu.memref_slice %arg4[%4, %c0_i32_1] : memref<11x128xf32, #tpu.memory_space<any>> -> memref<1x128xf32, #tpu.memory_space<any>>
    %c0_i32_2 = arith.constant 0 : i32
    %c0_i32_3 = arith.constant 0 : i32
    %6 = tpu.memref_slice %arg7[%c0_i32_2, %c0_i32_3] : memref<16x128xf32, #tpu.memory_space<vmem>> -> memref<1x128xf32, #tpu.memory_space<vmem>>
    %7 = tpu.memref_slice %arg8[%c0_i32_0] : memref<16x!tpu.dma_semaphore, #tpu.memory_space<semaphore_mem>> -> memref<1x!tpu.dma_semaphore, #tpu.memory_space<semaphore_mem>>
    %8 = tpu.memref_squeeze %7 : memref<1x!tpu.dma_semaphore, #tpu.memory_space<semaphore_mem>> -> memref<!tpu.dma_semaphore, #tpu.memory_space<semaphore_mem>>
    tpu.enqueue_dma source(%5 : memref<1x128xf32, #tpu.memory_space<any>>) target(%6 : memref<1x128xf32, #tpu.memory_space<vmem>>) target_semaphore(%8 : memref<!tpu.dma_semaphore, #tpu.memory_space<semaphore_mem>>)
    %c1_i32 = arith.constant 1 : i32
    %9 = arith.addi %0, %c1_i32 : i32
    %10 = arith.index_cast %arg0 : i32 to index
    %11 = arith.index_cast %9 : i32 to index
    %12 = memref.load %arg2[%10, %11] : memref<2x16xi32, #tpu.memory_space<smem>>
    %c1_i32_4 = arith.constant 1 : i32
    %c0_i32_5 = arith.constant 0 : i32
    %13 = tpu.memref_slice %arg4[%12, %c0_i32_5] : memref<11x128xf32, #tpu.memory_space<any>> -> memref<1x128xf32, #tpu.memory_space<any>>
    %c1_i32_6 = arith.constant 1 : i32
    %c0_i32_7 = arith.constant 0 : i32
    %14 = tpu.memref_slice %arg7[%c1_i32_6, %c0_i32_7] : memref<16x128xf32, #tpu.memory_space<vmem>> -> memref<1x128xf32, #tpu.memory_space<vmem>>
    %15 = tpu.memref_slice %arg8[%c1_i32_4] : memref<16x!tpu.dma_semaphore, #tpu.memory_space<semaphore_mem>> -> memref<1x!tpu.dma_semaphore, #tpu.memory_space<semaphore_mem>>
    %16 = tpu.memref_squeeze %15 : memref<1x!tpu.dma_semaphore, #tpu.memory_space<semaphore_mem>> -> memref<!tpu.dma_semaphore, #tpu.memory_space<semaphore_mem>>
    tpu.enqueue_dma source(%13 : memref<1x128xf32, #tpu.memory_space<any>>) target(%14 : memref<1x128xf32, #tpu.memory_space<vmem>>) target_semaphore(%16 : memref<!tpu.dma_semaphore, #tpu.memory_space<semaphore_mem>>)
    %c2_i32 = arith.constant 2 : i32
    %17 = arith.addi %0, %c2_i32 : i32
    %18 = arith.index_cast %arg0 : i32 to index
    %19 = arith.index_cast %17 : i32 to index
    %20 = memref.load %arg2[%18, %19] : memref<2x16xi32, #tpu.memory_space<smem>>
    %c2_i32_8 = arith.constant 2 : i32
    %c0_i32_9 = arith.constant 0 : i32
    %21 = tpu.memref_slice %arg4[%20, %c0_i32_9] : memref<11x128xf32, #tpu.memory_space<any>> -> memref<1x128xf32, #tpu.memory_space<any>>
    %c2_i32_10 = arith.constant 2 : i32
    %c0_i32_11 = arith.constant 0 : i32
    %22 = tpu.memref_slice %arg7[%c2_i32_10, %c0_i32_11] : memref<16x128xf32, #tpu.memory_space<vmem>> -> memref<1x128xf32, #tpu.memory_space<vmem>>
    %23 = tpu.memref_slice %arg8[%c2_i32_8] : memref<16x!tpu.dma_semaphore, #tpu.memory_space<semaphore_mem>> -> memref<1x!tpu.dma_semaphore, #tpu.memory_space<semaphore_mem>>
    %24 = tpu.memref_squeeze %23 : memref<1x!tpu.dma_semaphore, #tpu.memory_space<semaphore_mem>> -> memref<!tpu.dma_semaphore, #tpu.memory_space<semaphore_mem>>
    tpu.enqueue_dma source(%21 : memref<1x128xf32, #tpu.memory_space<any>>) target(%22 : memref<1x128xf32, #tpu.memory_space<vmem>>) target_semaphore(%24 : memref<!tpu.dma_semaphore, #tpu.memory_space<semaphore_mem>>)
    %c3_i32 = arith.constant 3 : i32
    %25 = arith.addi %0, %c3_i32 : i32
    %26 = arith.index_cast %arg0 : i32 to index
    %27 = arith.index_cast %25 : i32 to index
    %28 = memref.load %arg2[%26, %27] : memref<2x16xi32, #tpu.memory_space<smem>>
    %c3_i32_12 = arith.constant 3 : i32
    %c0_i32_13 = arith.constant 0 : i32
    %29 = tpu.memref_slice %arg4[%28, %c0_i32_13] : memref<11x128xf32, #tpu.memory_space<any>> -> memref<1x128xf32, #tpu.memory_space<any>>
    %c3_i32_14 = arith.constant 3 : i32
    %c0_i32_15 = arith.constant 0 : i32
    %30 = tpu.memref_slice %arg7[%c3_i32_14, %c0_i32_15] : memref<16x128xf32, #tpu.memory_space<vmem>> -> memref<1x128xf32, #tpu.memory_space<vmem>>
    %31 = tpu.memref_slice %arg8[%c3_i32_12] : memref<16x!tpu.dma_semaphore, #tpu.memory_space<semaphore_mem>> -> memref<1x!tpu.dma_semaphore, #tpu.memory_space<semaphore_mem>>
    %32 = tpu.memref_squeeze %31 : memref<1x!tpu.dma_semaphore, #tpu.memory_space<semaphore_mem>> -> memref<!tpu.dma_semaphore, #tpu.memory_space<semaphore_mem>>
    tpu.enqueue_dma source(%29 : memref<1x128xf32, #tpu.memory_space<any>>) target(%30 : memref<1x128xf32, #tpu.memory_space<vmem>>) target_semaphore(%32 : memref<!tpu.dma_semaphore, #tpu.memory_space<semaphore_mem>>)
    %c4_i32 = arith.constant 4 : i32
    %33 = arith.addi %0, %c4_i32 : i32
    %34 = arith.index_cast %arg0 : i32 to index
    %35 = arith.index_cast %33 : i32 to index
    %36 = memref.load %arg2[%34, %35] : memref<2x16xi32, #tpu.memory_space<smem>>
    %c4_i32_16 = arith.constant 4 : i32
    %c0_i32_17 = arith.constant 0 : i32
    %37 = tpu.memref_slice %arg4[%36, %c0_i32_17] : memref<11x128xf32, #tpu.memory_space<any>> -> memref<1x128xf32, #tpu.memory_space<any>>
    %c4_i32_18 = arith.constant 4 : i32
    %c0_i32_19 = arith.constant 0 : i32
    %38 = tpu.memref_slice %arg7[%c4_i32_18, %c0_i32_19] : memref<16x128xf32, #tpu.memory_space<vmem>> -> memref<1x128xf32, #tpu.memory_space<vmem>>
    %39 = tpu.memref_slice %arg8[%c4_i32_16] : memref<16x!tpu.dma_semaphore, #tpu.memory_space<semaphore_mem>> -> memref<1x!tpu.dma_semaphore, #tpu.memory_space<semaphore_mem>>
    %40 = tpu.memref_squeeze %39 : memref<1x!tpu.dma_semaphore, #tpu.memory_space<semaphore_mem>> -> memref<!tpu.dma_semaphore, #tpu.memory_space<semaphore_mem>>
    tpu.enqueue_dma source(%37 : memref<1x128xf32, #tpu.memory_space<any>>) target(%38 : memref<1x128xf32, #tpu.memory_space<vmem>>) target_semaphore(%40 : memref<!tpu.dma_semaphore, #tpu.memory_space<semaphore_mem>>)
    %c5_i32 = arith.constant 5 : i32
    %41 = arith.addi %0, %c5_i32 : i32
    %42 = arith.index_cast %arg0 : i32 to index
    %43 = arith.index_cast %41 : i32 to index
    %44 = memref.load %arg2[%42, %43] : memref<2x16xi32, #tpu.memory_space<smem>>
    %c5_i32_20 = arith.constant 5 : i32
    %c0_i32_21 = arith.constant 0 : i32
    %45 = tpu.memref_slice %arg4[%44, %c0_i32_21] : memref<11x128xf32, #tpu.memory_space<any>> -> memref<1x128xf32, #tpu.memory_space<any>>
    %c5_i32_22 = arith.constant 5 : i32
    %c0_i32_23 = arith.constant 0 : i32
    %46 = tpu.memref_slice %arg7[%c5_i32_22, %c0_i32_23] : memref<16x128xf32, #tpu.memory_space<vmem>> -> memref<1x128xf32, #tpu.memory_space<vmem>>
    %47 = tpu.memref_slice %arg8[%c5_i32_20] : memref<16x!tpu.dma_semaphore, #tpu.memory_space<semaphore_mem>> -> memref<1x!tpu.dma_semaphore, #tpu.memory_space<semaphore_mem>>
    %48 = tpu.memref_squeeze %47 : memref<1x!tpu.dma_semaphore, #tpu.memory_space<semaphore_mem>> -> memref<!tpu.dma_semaphore, #tpu.memory_space<semaphore_mem>>
    tpu.enqueue_dma source(%45 : memref<1x128xf32, #tpu.memory_space<any>>) target(%46 : memref<1x128xf32, #tpu.memory_space<vmem>>) target_semaphore(%48 : memref<!tpu.dma_semaphore, #tpu.memory_space<semaphore_mem>>)
    %c6_i32 = arith.constant 6 : i32
    %49 = arith.addi %0, %c6_i32 : i32
    %50 = arith.index_cast %arg0 : i32 to index
    %51 = arith.index_cast %49 : i32 to index
    %52 = memref.load %arg2[%50, %51] : memref<2x16xi32, #tpu.memory_space<smem>>
    %c6_i32_24 = arith.constant 6 : i32
    %c0_i32_25 = arith.constant 0 : i32
    %53 = tpu.memref_slice %arg4[%52, %c0_i32_25] : memref<11x128xf32, #tpu.memory_space<any>> -> memref<1x128xf32, #tpu.memory_space<any>>
    %c6_i32_26 = arith.constant 6 : i32
    %c0_i32_27 = arith.constant 0 : i32
    %54 = tpu.memref_slice %arg7[%c6_i32_26, %c0_i32_27] : memref<16x128xf32, #tpu.memory_space<vmem>> -> memref<1x128xf32, #tpu.memory_space<vmem>>
    %55 = tpu.memref_slice %arg8[%c6_i32_24] : memref<16x!tpu.dma_semaphore, #tpu.memory_space<semaphore_mem>> -> memref<1x!tpu.dma_semaphore, #tpu.memory_space<semaphore_mem>>
    %56 = tpu.memref_squeeze %55 : memref<1x!tpu.dma_semaphore, #tpu.memory_space<semaphore_mem>> -> memref<!tpu.dma_semaphore, #tpu.memory_space<semaphore_mem>>
    tpu.enqueue_dma source(%53 : memref<1x128xf32, #tpu.memory_space<any>>) target(%54 : memref<1x128xf32, #tpu.memory_space<vmem>>) target_semaphore(%56 : memref<!tpu.dma_semaphore, #tpu.memory_space<semaphore_mem>>)
    %c7_i32 = arith.constant 7 : i32
    %57 = arith.addi %0, %c7_i32 : i32
    %58 = arith.index_cast %arg0 : i32 to index
    %59 = arith.index_cast %57 : i32 to index
    %60 = memref.load %arg2[%58, %59] : memref<2x16xi32, #tpu.memory_space<smem>>
    %c7_i32_28 = arith.constant 7 : i32
    %c0_i32_29 = arith.constant 0 : i32
    %61 = tpu.memref_slice %arg4[%60, %c0_i32_29] : memref<11x128xf32, #tpu.memory_space<any>> -> memref<1x128xf32, #tpu.memory_space<any>>
    %c7_i32_30 = arith.constant 7 : i32
    %c0_i32_31 = arith.constant 0 : i32
    %62 = tpu.memref_slice %arg7[%c7_i32_30, %c0_i32_31] : memref<16x128xf32, #tpu.memory_space<vmem>> -> memref<1x128xf32, #tpu.memory_space<vmem>>
    %63 = tpu.memref_slice %arg8[%c7_i32_28] : memref<16x!tpu.dma_semaphore, #tpu.memory_space<semaphore_mem>> -> memref<1x!tpu.dma_semaphore, #tpu.memory_space<semaphore_mem>>
    %64 = tpu.memref_squeeze %63 : memref<1x!tpu.dma_semaphore, #tpu.memory_space<semaphore_mem>> -> memref<!tpu.dma_semaphore, #tpu.memory_space<semaphore_mem>>
    tpu.enqueue_dma source(%61 : memref<1x128xf32, #tpu.memory_space<any>>) target(%62 : memref<1x128xf32, #tpu.memory_space<vmem>>) target_semaphore(%64 : memref<!tpu.dma_semaphore, #tpu.memory_space<semaphore_mem>>)
    %c8_i32 = arith.constant 8 : i32
    %65 = arith.addi %0, %c8_i32 : i32
    %66 = arith.index_cast %arg0 : i32 to index
    %67 = arith.index_cast %65 : i32 to index
    %68 = memref.load %arg2[%66, %67] : memref<2x16xi32, #tpu.memory_space<smem>>
    %c8_i32_32 = arith.constant 8 : i32
    %c0_i32_33 = arith.constant 0 : i32
    %69 = tpu.memref_slice %arg4[%68, %c0_i32_33] : memref<11x128xf32, #tpu.memory_space<any>> -> memref<1x128xf32, #tpu.memory_space<any>>
    %c8_i32_34 = arith.constant 8 : i32
    %c0_i32_35 = arith.constant 0 : i32
    %70 = tpu.memref_slice %arg7[%c8_i32_34, %c0_i32_35] : memref<16x128xf32, #tpu.memory_space<vmem>> -> memref<1x128xf32, #tpu.memory_space<vmem>>
    %71 = tpu.memref_slice %arg8[%c8_i32_32] : memref<16x!tpu.dma_semaphore, #tpu.memory_space<semaphore_mem>> -> memref<1x!tpu.dma_semaphore, #tpu.memory_space<semaphore_mem>>
    %72 = tpu.memref_squeeze %71 : memref<1x!tpu.dma_semaphore, #tpu.memory_space<semaphore_mem>> -> memref<!tpu.dma_semaphore, #tpu.memory_space<semaphore_mem>>
    tpu.enqueue_dma source(%69 : memref<1x128xf32, #tpu.memory_space<any>>) target(%70 : memref<1x128xf32, #tpu.memory_space<vmem>>) target_semaphore(%72 : memref<!tpu.dma_semaphore, #tpu.memory_space<semaphore_mem>>)
    %c9_i32 = arith.constant 9 : i32
    %73 = arith.addi %0, %c9_i32 : i32
    %74 = arith.index_cast %arg0 : i32 to index
    %75 = arith.index_cast %73 : i32 to index
    %76 = memref.load %arg2[%74, %75] : memref<2x16xi32, #tpu.memory_space<smem>>
    %c9_i32_36 = arith.constant 9 : i32
    %c0_i32_37 = arith.constant 0 : i32
    %77 = tpu.memref_slice %arg4[%76, %c0_i32_37] : memref<11x128xf32, #tpu.memory_space<any>> -> memref<1x128xf32, #tpu.memory_space<any>>
    %c9_i32_38 = arith.constant 9 : i32
    %c0_i32_39 = arith.constant 0 : i32
    %78 = tpu.memref_slice %arg7[%c9_i32_38, %c0_i32_39] : memref<16x128xf32, #tpu.memory_space<vmem>> -> memref<1x128xf32, #tpu.memory_space<vmem>>
    %79 = tpu.memref_slice %arg8[%c9_i32_36] : memref<16x!tpu.dma_semaphore, #tpu.memory_space<semaphore_mem>> -> memref<1x!tpu.dma_semaphore, #tpu.memory_space<semaphore_mem>>
    %80 = tpu.memref_squeeze %79 : memref<1x!tpu.dma_semaphore, #tpu.memory_space<semaphore_mem>> -> memref<!tpu.dma_semaphore, #tpu.memory_space<semaphore_mem>>
    tpu.enqueue_dma source(%77 : memref<1x128xf32, #tpu.memory_space<any>>) target(%78 : memref<1x128xf32, #tpu.memory_space<vmem>>) target_semaphore(%80 : memref<!tpu.dma_semaphore, #tpu.memory_space<semaphore_mem>>)
    %c10_i32 = arith.constant 10 : i32
    %81 = arith.addi %0, %c10_i32 : i32
    %82 = arith.index_cast %arg0 : i32 to index
    %83 = arith.index_cast %81 : i32 to index
    %84 = memref.load %arg2[%82, %83] : memref<2x16xi32, #tpu.memory_space<smem>>
    %c10_i32_40 = arith.constant 10 : i32
    %c0_i32_41 = arith.constant 0 : i32
    %85 = tpu.memref_slice %arg4[%84, %c0_i32_41] : memref<11x128xf32, #tpu.memory_space<any>> -> memref<1x128xf32, #tpu.memory_space<any>>
    %c10_i32_42 = arith.constant 10 : i32
    %c0_i32_43 = arith.constant 0 : i32
    %86 = tpu.memref_slice %arg7[%c10_i32_42, %c0_i32_43] : memref<16x128xf32, #tpu.memory_space<vmem>> -> memref<1x128xf32, #tpu.memory_space<vmem>>
    %87 = tpu.memref_slice %arg8[%c10_i32_40] : memref<16x!tpu.dma_semaphore, #tpu.memory_space<semaphore_mem>> -> memref<1x!tpu.dma_semaphore, #tpu.memory_space<semaphore_mem>>
    %88 = tpu.memref_squeeze %87 : memref<1x!tpu.dma_semaphore, #tpu.memory_space<semaphore_mem>> -> memref<!tpu.dma_semaphore, #tpu.memory_space<semaphore_mem>>
    tpu.enqueue_dma source(%85 : memref<1x128xf32, #tpu.memory_space<any>>) target(%86 : memref<1x128xf32, #tpu.memory_space<vmem>>) target_semaphore(%88 : memref<!tpu.dma_semaphore, #tpu.memory_space<semaphore_mem>>)
    %c11_i32 = arith.constant 11 : i32
    %89 = arith.addi %0, %c11_i32 : i32
    %90 = arith.index_cast %arg0 : i32 to index
    %91 = arith.index_cast %89 : i32 to index
    %92 = memref.load %arg2[%90, %91] : memref<2x16xi32, #tpu.memory_space<smem>>
    %c11_i32_44 = arith.constant 11 : i32
    %c0_i32_45 = arith.constant 0 : i32
    %93 = tpu.memref_slice %arg4[%92, %c0_i32_45] : memref<11x128xf32, #tpu.memory_space<any>> -> memref<1x128xf32, #tpu.memory_space<any>>
    %c11_i32_46 = arith.constant 11 : i32
    %c0_i32_47 = arith.constant 0 : i32
    %94 = tpu.memref_slice %arg7[%c11_i32_46, %c0_i32_47] : memref<16x128xf32, #tpu.memory_space<vmem>> -> memref<1x128xf32, #tpu.memory_space<vmem>>
    %95 = tpu.memref_slice %arg8[%c11_i32_44] : memref<16x!tpu.dma_semaphore, #tpu.memory_space<semaphore_mem>> -> memref<1x!tpu.dma_semaphore, #tpu.memory_space<semaphore_mem>>
    %96 = tpu.memref_squeeze %95 : memref<1x!tpu.dma_semaphore, #tpu.memory_space<semaphore_mem>> -> memref<!tpu.dma_semaphore, #tpu.memory_space<semaphore_mem>>
    tpu.enqueue_dma source(%93 : memref<1x128xf32, #tpu.memory_space<any>>) target(%94 : memref<1x128xf32, #tpu.memory_space<vmem>>) target_semaphore(%96 : memref<!tpu.dma_semaphore, #tpu.memory_space<semaphore_mem>>)
    %c12_i32 = arith.constant 12 : i32
    %97 = arith.addi %0, %c12_i32 : i32
    %98 = arith.index_cast %arg0 : i32 to index
    %99 = arith.index_cast %97 : i32 to index
    %100 = memref.load %arg2[%98, %99] : memref<2x16xi32, #tpu.memory_space<smem>>
    %c12_i32_48 = arith.constant 12 : i32
    %c0_i32_49 = arith.constant 0 : i32
    %101 = tpu.memref_slice %arg4[%100, %c0_i32_49] : memref<11x128xf32, #tpu.memory_space<any>> -> memref<1x128xf32, #tpu.memory_space<any>>
    %c12_i32_50 = arith.constant 12 : i32
    %c0_i32_51 = arith.constant 0 : i32
    %102 = tpu.memref_slice %arg7[%c12_i32_50, %c0_i32_51] : memref<16x128xf32, #tpu.memory_space<vmem>> -> memref<1x128xf32, #tpu.memory_space<vmem>>
    %103 = tpu.memref_slice %arg8[%c12_i32_48] : memref<16x!tpu.dma_semaphore, #tpu.memory_space<semaphore_mem>> -> memref<1x!tpu.dma_semaphore, #tpu.memory_space<semaphore_mem>>
    %104 = tpu.memref_squeeze %103 : memref<1x!tpu.dma_semaphore, #tpu.memory_space<semaphore_mem>> -> memref<!tpu.dma_semaphore, #tpu.memory_space<semaphore_mem>>
    tpu.enqueue_dma source(%101 : memref<1x128xf32, #tpu.memory_space<any>>) target(%102 : memref<1x128xf32, #tpu.memory_space<vmem>>) target_semaphore(%104 : memref<!tpu.dma_semaphore, #tpu.memory_space<semaphore_mem>>)
    %c13_i32 = arith.constant 13 : i32
    %105 = arith.addi %0, %c13_i32 : i32
    %106 = arith.index_cast %arg0 : i32 to index
    %107 = arith.index_cast %105 : i32 to index
    %108 = memref.load %arg2[%106, %107] : memref<2x16xi32, #tpu.memory_space<smem>>
    %c13_i32_52 = arith.constant 13 : i32
    %c0_i32_53 = arith.constant 0 : i32
    %109 = tpu.memref_slice %arg4[%108, %c0_i32_53] : memref<11x128xf32, #tpu.memory_space<any>> -> memref<1x128xf32, #tpu.memory_space<any>>
    %c13_i32_54 = arith.constant 13 : i32
    %c0_i32_55 = arith.constant 0 : i32
    %110 = tpu.memref_slice %arg7[%c13_i32_54, %c0_i32_55] : memref<16x128xf32, #tpu.memory_space<vmem>> -> memref<1x128xf32, #tpu.memory_space<vmem>>
    %111 = tpu.memref_slice %arg8[%c13_i32_52] : memref<16x!tpu.dma_semaphore, #tpu.memory_space<semaphore_mem>> -> memref<1x!tpu.dma_semaphore, #tpu.memory_space<semaphore_mem>>
    %112 = tpu.memref_squeeze %111 : memref<1x!tpu.dma_semaphore, #tpu.memory_space<semaphore_mem>> -> memref<!tpu.dma_semaphore, #tpu.memory_space<semaphore_mem>>
    tpu.enqueue_dma source(%109 : memref<1x128xf32, #tpu.memory_space<any>>) target(%110 : memref<1x128xf32, #tpu.memory_space<vmem>>) target_semaphore(%112 : memref<!tpu.dma_semaphore, #tpu.memory_space<semaphore_mem>>)
    %c14_i32 = arith.constant 14 : i32
    %113 = arith.addi %0, %c14_i32 : i32
    %114 = arith.index_cast %arg0 : i32 to index
    %115 = arith.index_cast %113 : i32 to index
    %116 = memref.load %arg2[%114, %115] : memref<2x16xi32, #tpu.memory_space<smem>>
    %c14_i32_56 = arith.constant 14 : i32
    %c0_i32_57 = arith.constant 0 : i32
    %117 = tpu.memref_slice %arg4[%116, %c0_i32_57] : memref<11x128xf32, #tpu.memory_space<any>> -> memref<1x128xf32, #tpu.memory_space<any>>
    %c14_i32_58 = arith.constant 14 : i32
    %c0_i32_59 = arith.constant 0 : i32
    %118 = tpu.memref_slice %arg7[%c14_i32_58, %c0_i32_59] : memref<16x128xf32, #tpu.memory_space<vmem>> -> memref<1x128xf32, #tpu.memory_space<vmem>>
    %119 = tpu.memref_slice %arg8[%c14_i32_56] : memref<16x!tpu.dma_semaphore, #tpu.memory_space<semaphore_mem>> -> memref<1x!tpu.dma_semaphore, #tpu.memory_space<semaphore_mem>>
    %120 = tpu.memref_squeeze %119 : memref<1x!tpu.dma_semaphore, #tpu.memory_space<semaphore_mem>> -> memref<!tpu.dma_semaphore, #tpu.memory_space<semaphore_mem>>
    tpu.enqueue_dma source(%117 : memref<1x128xf32, #tpu.memory_space<any>>) target(%118 : memref<1x128xf32, #tpu.memory_space<vmem>>) target_semaphore(%120 : memref<!tpu.dma_semaphore, #tpu.memory_space<semaphore_mem>>)
    %c15_i32 = arith.constant 15 : i32
    %121 = arith.addi %0, %c15_i32 : i32
    %122 = arith.index_cast %arg0 : i32 to index
    %123 = arith.index_cast %121 : i32 to index
    %124 = memref.load %arg2[%122, %123] : memref<2x16xi32, #tpu.memory_space<smem>>
    %c15_i32_60 = arith.constant 15 : i32
    %c0_i32_61 = arith.constant 0 : i32
    %125 = tpu.memref_slice %arg4[%124, %c0_i32_61] : memref<11x128xf32, #tpu.memory_space<any>> -> memref<1x128xf32, #tpu.memory_space<any>>
    %c15_i32_62 = arith.constant 15 : i32
    %c0_i32_63 = arith.constant 0 : i32
    %126 = tpu.memref_slice %arg7[%c15_i32_62, %c0_i32_63] : memref<16x128xf32, #tpu.memory_space<vmem>> -> memref<1x128xf32, #tpu.memory_space<vmem>>
    %127 = tpu.memref_slice %arg8[%c15_i32_60] : memref<16x!tpu.dma_semaphore, #tpu.memory_space<semaphore_mem>> -> memref<1x!tpu.dma_semaphore, #tpu.memory_space<semaphore_mem>>
    %128 = tpu.memref_squeeze %127 : memref<1x!tpu.dma_semaphore, #tpu.memory_space<semaphore_mem>> -> memref<!tpu.dma_semaphore, #tpu.memory_space<semaphore_mem>>
    tpu.enqueue_dma source(%125 : memref<1x128xf32, #tpu.memory_space<any>>) target(%126 : memref<1x128xf32, #tpu.memory_space<vmem>>) target_semaphore(%128 : memref<!tpu.dma_semaphore, #tpu.memory_space<semaphore_mem>>)
    %c0_i32_64 = arith.constant 0 : i32
    %c0_i32_65 = arith.constant 0 : i32
    %129 = tpu.memref_slice %arg4[%4, %c0_i32_65] : memref<11x128xf32, #tpu.memory_space<any>> -> memref<1x128xf32, #tpu.memory_space<any>>
    %c0_i32_66 = arith.constant 0 : i32
    %c0_i32_67 = arith.constant 0 : i32
    %130 = tpu.memref_slice %arg7[%c0_i32_66, %c0_i32_67] : memref<16x128xf32, #tpu.memory_space<vmem>> -> memref<1x128xf32, #tpu.memory_space<vmem>>
    %131 = tpu.memref_slice %arg8[%c0_i32_64] : memref<16x!tpu.dma_semaphore, #tpu.memory_space<semaphore_mem>> -> memref<1x!tpu.dma_semaphore, #tpu.memory_space<semaphore_mem>>
    %132 = tpu.memref_squeeze %131 : memref<1x!tpu.dma_semaphore, #tpu.memory_space<semaphore_mem>> -> memref<!tpu.dma_semaphore, #tpu.memory_space<semaphore_mem>>
    tpu.wait_dma2 semaphore(%132 : memref<!tpu.dma_semaphore, #tpu.memory_space<semaphore_mem>>) src(%129 : memref<1x128xf32, #tpu.memory_space<any>>) dst(%130 : memref<1x128xf32, #tpu.memory_space<vmem>>)
    %c1_i32_68 = arith.constant 1 : i32
    %c0_i32_69 = arith.constant 0 : i32
    %133 = tpu.memref_slice %arg4[%12, %c0_i32_69] : memref<11x128xf32, #tpu.memory_space<any>> -> memref<1x128xf32, #tpu.memory_space<any>>
    %c1_i32_70 = arith.constant 1 : i32
    %c0_i32_71 = arith.constant 0 : i32
    %134 = tpu.memref_slice %arg7[%c1_i32_70, %c0_i32_71] : memref<16x128xf32, #tpu.memory_space<vmem>> -> memref<1x128xf32, #tpu.memory_space<vmem>>
    %135 = tpu.memref_slice %arg8[%c1_i32_68] : memref<16x!tpu.dma_semaphore, #tpu.memory_space<semaphore_mem>> -> memref<1x!tpu.dma_semaphore, #tpu.memory_space<semaphore_mem>>
    %136 = tpu.memref_squeeze %135 : memref<1x!tpu.dma_semaphore, #tpu.memory_space<semaphore_mem>> -> memref<!tpu.dma_semaphore, #tpu.memory_space<semaphore_mem>>
    tpu.wait_dma2 semaphore(%136 : memref<!tpu.dma_semaphore, #tpu.memory_space<semaphore_mem>>) src(%133 : memref<1x128xf32, #tpu.memory_space<any>>) dst(%134 : memref<1x128xf32, #tpu.memory_space<vmem>>)
    %c2_i32_72 = arith.constant 2 : i32
    %c0_i32_73 = arith.constant 0 : i32
    %137 = tpu.memref_slice %arg4[%20, %c0_i32_73] : memref<11x128xf32, #tpu.memory_space<any>> -> memref<1x128xf32, #tpu.memory_space<any>>
    %c2_i32_74 = arith.constant 2 : i32
    %c0_i32_75 = arith.constant 0 : i32
    %138 = tpu.memref_slice %arg7[%c2_i32_74, %c0_i32_75] : memref<16x128xf32, #tpu.memory_space<vmem>> -> memref<1x128xf32, #tpu.memory_space<vmem>>
    %139 = tpu.memref_slice %arg8[%c2_i32_72] : memref<16x!tpu.dma_semaphore, #tpu.memory_space<semaphore_mem>> -> memref<1x!tpu.dma_semaphore, #tpu.memory_space<semaphore_mem>>
    %140 = tpu.memref_squeeze %139 : memref<1x!tpu.dma_semaphore, #tpu.memory_space<semaphore_mem>> -> memref<!tpu.dma_semaphore, #tpu.memory_space<semaphore_mem>>
    tpu.wait_dma2 semaphore(%140 : memref<!tpu.dma_semaphore, #tpu.memory_space<semaphore_mem>>) src(%137 : memref<1x128xf32, #tpu.memory_space<any>>) dst(%138 : memref<1x128xf32, #tpu.memory_space<vmem>>)
    %c3_i32_76 = arith.constant 3 : i32
    %c0_i32_77 = arith.constant 0 : i32
    %141 = tpu.memref_slice %arg4[%28, %c0_i32_77] : memref<11x128xf32, #tpu.memory_space<any>> -> memref<1x128xf32, #tpu.memory_space<any>>
    %c3_i32_78 = arith.constant 3 : i32
    %c0_i32_79 = arith.constant 0 : i32
    %142 = tpu.memref_slice %arg7[%c3_i32_78, %c0_i32_79] : memref<16x128xf32, #tpu.memory_space<vmem>> -> memref<1x128xf32, #tpu.memory_space<vmem>>
    %143 = tpu.memref_slice %arg8[%c3_i32_76] : memref<16x!tpu.dma_semaphore, #tpu.memory_space<semaphore_mem>> -> memref<1x!tpu.dma_semaphore, #tpu.memory_space<semaphore_mem>>
    %144 = tpu.memref_squeeze %143 : memref<1x!tpu.dma_semaphore, #tpu.memory_space<semaphore_mem>> -> memref<!tpu.dma_semaphore, #tpu.memory_space<semaphore_mem>>
    tpu.wait_dma2 semaphore(%144 : memref<!tpu.dma_semaphore, #tpu.memory_space<semaphore_mem>>) src(%141 : memref<1x128xf32, #tpu.memory_space<any>>) dst(%142 : memref<1x128xf32, #tpu.memory_space<vmem>>)
    %c4_i32_80 = arith.constant 4 : i32
    %c0_i32_81 = arith.constant 0 : i32
    %145 = tpu.memref_slice %arg4[%36, %c0_i32_81] : memref<11x128xf32, #tpu.memory_space<any>> -> memref<1x128xf32, #tpu.memory_space<any>>
    %c4_i32_82 = arith.constant 4 : i32
    %c0_i32_83 = arith.constant 0 : i32
    %146 = tpu.memref_slice %arg7[%c4_i32_82, %c0_i32_83] : memref<16x128xf32, #tpu.memory_space<vmem>> -> memref<1x128xf32, #tpu.memory_space<vmem>>
    %147 = tpu.memref_slice %arg8[%c4_i32_80] : memref<16x!tpu.dma_semaphore, #tpu.memory_space<semaphore_mem>> -> memref<1x!tpu.dma_semaphore, #tpu.memory_space<semaphore_mem>>
    %148 = tpu.memref_squeeze %147 : memref<1x!tpu.dma_semaphore, #tpu.memory_space<semaphore_mem>> -> memref<!tpu.dma_semaphore, #tpu.memory_space<semaphore_mem>>
    tpu.wait_dma2 semaphore(%148 : memref<!tpu.dma_semaphore, #tpu.memory_space<semaphore_mem>>) src(%145 : memref<1x128xf32, #tpu.memory_space<any>>) dst(%146 : memref<1x128xf32, #tpu.memory_space<vmem>>)
    %c5_i32_84 = arith.constant 5 : i32
    %c0_i32_85 = arith.constant 0 : i32
    %149 = tpu.memref_slice %arg4[%44, %c0_i32_85] : memref<11x128xf32, #tpu.memory_space<any>> -> memref<1x128xf32, #tpu.memory_space<any>>
    %c5_i32_86 = arith.constant 5 : i32
    %c0_i32_87 = arith.constant 0 : i32
    %150 = tpu.memref_slice %arg7[%c5_i32_86, %c0_i32_87] : memref<16x128xf32, #tpu.memory_space<vmem>> -> memref<1x128xf32, #tpu.memory_space<vmem>>
    %151 = tpu.memref_slice %arg8[%c5_i32_84] : memref<16x!tpu.dma_semaphore, #tpu.memory_space<semaphore_mem>> -> memref<1x!tpu.dma_semaphore, #tpu.memory_space<semaphore_mem>>
    %152 = tpu.memref_squeeze %151 : memref<1x!tpu.dma_semaphore, #tpu.memory_space<semaphore_mem>> -> memref<!tpu.dma_semaphore, #tpu.memory_space<semaphore_mem>>
    tpu.wait_dma2 semaphore(%152 : memref<!tpu.dma_semaphore, #tpu.memory_space<semaphore_mem>>) src(%149 : memref<1x128xf32, #tpu.memory_space<any>>) dst(%150 : memref<1x128xf32, #tpu.memory_space<vmem>>)
    %c6_i32_88 = arith.constant 6 : i32
    %c0_i32_89 = arith.constant 0 : i32
    %153 = tpu.memref_slice %arg4[%52, %c0_i32_89] : memref<11x128xf32, #tpu.memory_space<any>> -> memref<1x128xf32, #tpu.memory_space<any>>
    %c6_i32_90 = arith.constant 6 : i32
    %c0_i32_91 = arith.constant 0 : i32
    %154 = tpu.memref_slice %arg7[%c6_i32_90, %c0_i32_91] : memref<16x128xf32, #tpu.memory_space<vmem>> -> memref<1x128xf32, #tpu.memory_space<vmem>>
    %155 = tpu.memref_slice %arg8[%c6_i32_88] : memref<16x!tpu.dma_semaphore, #tpu.memory_space<semaphore_mem>> -> memref<1x!tpu.dma_semaphore, #tpu.memory_space<semaphore_mem>>
    %156 = tpu.memref_squeeze %155 : memref<1x!tpu.dma_semaphore, #tpu.memory_space<semaphore_mem>> -> memref<!tpu.dma_semaphore, #tpu.memory_space<semaphore_mem>>
    tpu.wait_dma2 semaphore(%156 : memref<!tpu.dma_semaphore, #tpu.memory_space<semaphore_mem>>) src(%153 : memref<1x128xf32, #tpu.memory_space<any>>) dst(%154 : memref<1x128xf32, #tpu.memory_space<vmem>>)
    %c7_i32_92 = arith.constant 7 : i32
    %c0_i32_93 = arith.constant 0 : i32
    %157 = tpu.memref_slice %arg4[%60, %c0_i32_93] : memref<11x128xf32, #tpu.memory_space<any>> -> memref<1x128xf32, #tpu.memory_space<any>>
    %c7_i32_94 = arith.constant 7 : i32
    %c0_i32_95 = arith.constant 0 : i32
    %158 = tpu.memref_slice %arg7[%c7_i32_94, %c0_i32_95] : memref<16x128xf32, #tpu.memory_space<vmem>> -> memref<1x128xf32, #tpu.memory_space<vmem>>
    %159 = tpu.memref_slice %arg8[%c7_i32_92] : memref<16x!tpu.dma_semaphore, #tpu.memory_space<semaphore_mem>> -> memref<1x!tpu.dma_semaphore, #tpu.memory_space<semaphore_mem>>
    %160 = tpu.memref_squeeze %159 : memref<1x!tpu.dma_semaphore, #tpu.memory_space<semaphore_mem>> -> memref<!tpu.dma_semaphore, #tpu.memory_space<semaphore_mem>>
    tpu.wait_dma2 semaphore(%160 : memref<!tpu.dma_semaphore, #tpu.memory_space<semaphore_mem>>) src(%157 : memref<1x128xf32, #tpu.memory_space<any>>) dst(%158 : memref<1x128xf32, #tpu.memory_space<vmem>>)
    %c8_i32_96 = arith.constant 8 : i32
    %c0_i32_97 = arith.constant 0 : i32
    %161 = tpu.memref_slice %arg4[%68, %c0_i32_97] : memref<11x128xf32, #tpu.memory_space<any>> -> memref<1x128xf32, #tpu.memory_space<any>>
    %c8_i32_98 = arith.constant 8 : i32
    %c0_i32_99 = arith.constant 0 : i32
    %162 = tpu.memref_slice %arg7[%c8_i32_98, %c0_i32_99] : memref<16x128xf32, #tpu.memory_space<vmem>> -> memref<1x128xf32, #tpu.memory_space<vmem>>
    %163 = tpu.memref_slice %arg8[%c8_i32_96] : memref<16x!tpu.dma_semaphore, #tpu.memory_space<semaphore_mem>> -> memref<1x!tpu.dma_semaphore, #tpu.memory_space<semaphore_mem>>
    %164 = tpu.memref_squeeze %163 : memref<1x!tpu.dma_semaphore, #tpu.memory_space<semaphore_mem>> -> memref<!tpu.dma_semaphore, #tpu.memory_space<semaphore_mem>>
    tpu.wait_dma2 semaphore(%164 : memref<!tpu.dma_semaphore, #tpu.memory_space<semaphore_mem>>) src(%161 : memref<1x128xf32, #tpu.memory_space<any>>) dst(%162 : memref<1x128xf32, #tpu.memory_space<vmem>>)
    %c9_i32_100 = arith.constant 9 : i32
    %c0_i32_101 = arith.constant 0 : i32
    %165 = tpu.memref_slice %arg4[%76, %c0_i32_101] : memref<11x128xf32, #tpu.memory_space<any>> -> memref<1x128xf32, #tpu.memory_space<any>>
    %c9_i32_102 = arith.constant 9 : i32
    %c0_i32_103 = arith.constant 0 : i32
    %166 = tpu.memref_slice %arg7[%c9_i32_102, %c0_i32_103] : memref<16x128xf32, #tpu.memory_space<vmem>> -> memref<1x128xf32, #tpu.memory_space<vmem>>
    %167 = tpu.memref_slice %arg8[%c9_i32_100] : memref<16x!tpu.dma_semaphore, #tpu.memory_space<semaphore_mem>> -> memref<1x!tpu.dma_semaphore, #tpu.memory_space<semaphore_mem>>
    %168 = tpu.memref_squeeze %167 : memref<1x!tpu.dma_semaphore, #tpu.memory_space<semaphore_mem>> -> memref<!tpu.dma_semaphore, #tpu.memory_space<semaphore_mem>>
    tpu.wait_dma2 semaphore(%168 : memref<!tpu.dma_semaphore, #tpu.memory_space<semaphore_mem>>) src(%165 : memref<1x128xf32, #tpu.memory_space<any>>) dst(%166 : memref<1x128xf32, #tpu.memory_space<vmem>>)
    %c10_i32_104 = arith.constant 10 : i32
    %c0_i32_105 = arith.constant 0 : i32
    %169 = tpu.memref_slice %arg4[%84, %c0_i32_105] : memref<11x128xf32, #tpu.memory_space<any>> -> memref<1x128xf32, #tpu.memory_space<any>>
    %c10_i32_106 = arith.constant 10 : i32
    %c0_i32_107 = arith.constant 0 : i32
    %170 = tpu.memref_slice %arg7[%c10_i32_106, %c0_i32_107] : memref<16x128xf32, #tpu.memory_space<vmem>> -> memref<1x128xf32, #tpu.memory_space<vmem>>
    %171 = tpu.memref_slice %arg8[%c10_i32_104] : memref<16x!tpu.dma_semaphore, #tpu.memory_space<semaphore_mem>> -> memref<1x!tpu.dma_semaphore, #tpu.memory_space<semaphore_mem>>
    %172 = tpu.memref_squeeze %171 : memref<1x!tpu.dma_semaphore, #tpu.memory_space<semaphore_mem>> -> memref<!tpu.dma_semaphore, #tpu.memory_space<semaphore_mem>>
    tpu.wait_dma2 semaphore(%172 : memref<!tpu.dma_semaphore, #tpu.memory_space<semaphore_mem>>) src(%169 : memref<1x128xf32, #tpu.memory_space<any>>) dst(%170 : memref<1x128xf32, #tpu.memory_space<vmem>>)
    %c11_i32_108 = arith.constant 11 : i32
    %c0_i32_109 = arith.constant 0 : i32
    %173 = tpu.memref_slice %arg4[%92, %c0_i32_109] : memref<11x128xf32, #tpu.memory_space<any>> -> memref<1x128xf32, #tpu.memory_space<any>>
    %c11_i32_110 = arith.constant 11 : i32
    %c0_i32_111 = arith.constant 0 : i32
    %174 = tpu.memref_slice %arg7[%c11_i32_110, %c0_i32_111] : memref<16x128xf32, #tpu.memory_space<vmem>> -> memref<1x128xf32, #tpu.memory_space<vmem>>
    %175 = tpu.memref_slice %arg8[%c11_i32_108] : memref<16x!tpu.dma_semaphore, #tpu.memory_space<semaphore_mem>> -> memref<1x!tpu.dma_semaphore, #tpu.memory_space<semaphore_mem>>
    %176 = tpu.memref_squeeze %175 : memref<1x!tpu.dma_semaphore, #tpu.memory_space<semaphore_mem>> -> memref<!tpu.dma_semaphore, #tpu.memory_space<semaphore_mem>>
    tpu.wait_dma2 semaphore(%176 : memref<!tpu.dma_semaphore, #tpu.memory_space<semaphore_mem>>) src(%173 : memref<1x128xf32, #tpu.memory_space<any>>) dst(%174 : memref<1x128xf32, #tpu.memory_space<vmem>>)
    %c12_i32_112 = arith.constant 12 : i32
    %c0_i32_113 = arith.constant 0 : i32
    %177 = tpu.memref_slice %arg4[%100, %c0_i32_113] : memref<11x128xf32, #tpu.memory_space<any>> -> memref<1x128xf32, #tpu.memory_space<any>>
    %c12_i32_114 = arith.constant 12 : i32
    %c0_i32_115 = arith.constant 0 : i32
    %178 = tpu.memref_slice %arg7[%c12_i32_114, %c0_i32_115] : memref<16x128xf32, #tpu.memory_space<vmem>> -> memref<1x128xf32, #tpu.memory_space<vmem>>
    %179 = tpu.memref_slice %arg8[%c12_i32_112] : memref<16x!tpu.dma_semaphore, #tpu.memory_space<semaphore_mem>> -> memref<1x!tpu.dma_semaphore, #tpu.memory_space<semaphore_mem>>
    %180 = tpu.memref_squeeze %179 : memref<1x!tpu.dma_semaphore, #tpu.memory_space<semaphore_mem>> -> memref<!tpu.dma_semaphore, #tpu.memory_space<semaphore_mem>>
    tpu.wait_dma2 semaphore(%180 : memref<!tpu.dma_semaphore, #tpu.memory_space<semaphore_mem>>) src(%177 : memref<1x128xf32, #tpu.memory_space<any>>) dst(%178 : memref<1x128xf32, #tpu.memory_space<vmem>>)
    %c13_i32_116 = arith.constant 13 : i32
    %c0_i32_117 = arith.constant 0 : i32
    %181 = tpu.memref_slice %arg4[%108, %c0_i32_117] : memref<11x128xf32, #tpu.memory_space<any>> -> memref<1x128xf32, #tpu.memory_space<any>>
    %c13_i32_118 = arith.constant 13 : i32
    %c0_i32_119 = arith.constant 0 : i32
    %182 = tpu.memref_slice %arg7[%c13_i32_118, %c0_i32_119] : memref<16x128xf32, #tpu.memory_space<vmem>> -> memref<1x128xf32, #tpu.memory_space<vmem>>
    %183 = tpu.memref_slice %arg8[%c13_i32_116] : memref<16x!tpu.dma_semaphore, #tpu.memory_space<semaphore_mem>> -> memref<1x!tpu.dma_semaphore, #tpu.memory_space<semaphore_mem>>
    %184 = tpu.memref_squeeze %183 : memref<1x!tpu.dma_semaphore, #tpu.memory_space<semaphore_mem>> -> memref<!tpu.dma_semaphore, #tpu.memory_space<semaphore_mem>>
    tpu.wait_dma2 semaphore(%184 : memref<!tpu.dma_semaphore, #tpu.memory_space<semaphore_mem>>) src(%181 : memref<1x128xf32, #tpu.memory_space<any>>) dst(%182 : memref<1x128xf32, #tpu.memory_space<vmem>>)
    %c14_i32_120 = arith.constant 14 : i32
    %c0_i32_121 = arith.constant 0 : i32
    %185 = tpu.memref_slice %arg4[%116, %c0_i32_121] : memref<11x128xf32, #tpu.memory_space<any>> -> memref<1x128xf32, #tpu.memory_space<any>>
    %c14_i32_122 = arith.constant 14 : i32
    %c0_i32_123 = arith.constant 0 : i32
    %186 = tpu.memref_slice %arg7[%c14_i32_122, %c0_i32_123] : memref<16x128xf32, #tpu.memory_space<vmem>> -> memref<1x128xf32, #tpu.memory_space<vmem>>
    %187 = tpu.memref_slice %arg8[%c14_i32_120] : memref<16x!tpu.dma_semaphore, #tpu.memory_space<semaphore_mem>> -> memref<1x!tpu.dma_semaphore, #tpu.memory_space<semaphore_mem>>
    %188 = tpu.memref_squeeze %187 : memref<1x!tpu.dma_semaphore, #tpu.memory_space<semaphore_mem>> -> memref<!tpu.dma_semaphore, #tpu.memory_space<semaphore_mem>>
    tpu.wait_dma2 semaphore(%188 : memref<!tpu.dma_semaphore, #tpu.memory_space<semaphore_mem>>) src(%185 : memref<1x128xf32, #tpu.memory_space<any>>) dst(%186 : memref<1x128xf32, #tpu.memory_space<vmem>>)
    %c15_i32_124 = arith.constant 15 : i32
    %c0_i32_125 = arith.constant 0 : i32
    %189 = tpu.memref_slice %arg4[%124, %c0_i32_125] : memref<11x128xf32, #tpu.memory_space<any>> -> memref<1x128xf32, #tpu.memory_space<any>>
    %c15_i32_126 = arith.constant 15 : i32
    %c0_i32_127 = arith.constant 0 : i32
    %190 = tpu.memref_slice %arg7[%c15_i32_126, %c0_i32_127] : memref<16x128xf32, #tpu.memory_space<vmem>> -> memref<1x128xf32, #tpu.memory_space<vmem>>
    %191 = tpu.memref_slice %arg8[%c15_i32_124] : memref<16x!tpu.dma_semaphore, #tpu.memory_space<semaphore_mem>> -> memref<1x!tpu.dma_semaphore, #tpu.memory_space<semaphore_mem>>
    %192 = tpu.memref_squeeze %191 : memref<1x!tpu.dma_semaphore, #tpu.memory_space<semaphore_mem>> -> memref<!tpu.dma_semaphore, #tpu.memory_space<semaphore_mem>>
    tpu.wait_dma2 semaphore(%192 : memref<!tpu.dma_semaphore, #tpu.memory_space<semaphore_mem>>) src(%189 : memref<1x128xf32, #tpu.memory_space<any>>) dst(%190 : memref<1x128xf32, #tpu.memory_space<vmem>>)
    %c0 = arith.constant 0 : index
    %c0_128 = arith.constant 0 : index
    %193 = vector.load %arg7[%c0, %c0_128] : memref<16x128xf32, #tpu.memory_space<vmem>>, vector<16x128xf32>
    %c0_129 = arith.constant 0 : index
    %c0_130 = arith.constant 0 : index
    %194 = vector.load %arg5[%c0_129, %c0_130] : memref<16x128xf32, #tpu.memory_space<vmem>>, vector<16x128xf32>
    %195 = arith.addf %193, %194 : vector<16x128xf32>
    %c0_131 = arith.constant 0 : index
    %c0_132 = arith.constant 0 : index
    %c0_133 = arith.constant 0 : index
    %196 = vector.load %arg6[%c0_131, %c0_132, %c0_133] : memref<1x16x128xf32, #tpu.memory_space<vmem>>, vector<1x16x128xf32>
    %197 = vector.shape_cast %196 : vector<1x16x128xf32> to vector<16x128xf32>
    %198 = vector.shape_cast %195 : vector<16x128xf32> to vector<1x16x128xf32>
    tpu.vector_store %arg6[%c0_131, %c0_132, %c0_133], %198 {strides = array<i32>} : memref<1x16x128xf32, #tpu.memory_space<vmem>>, vector<1x16x128xf32>,
    return
  }
  func.func @transform_1(%arg0: i32, %arg1: i32, %arg2: memref<2x16xi32, #tpu.memory_space<smem>>, %arg3: memref<1xi32, #tpu.memory_space<smem>>) -> (i32, i32) {
    %c0_i32 = arith.constant 0 : i32
    %c0_i32_0 = arith.constant 0 : i32
    return %arg1, %c0_i32 : i32, i32
  }
  func.func @transform_2(%arg0: i32, %arg1: i32, %arg2: memref<2x16xi32, #tpu.memory_space<smem>>, %arg3: memref<1xi32, #tpu.memory_space<smem>>) -> (i32, i32, i32) {
    %c0_i32 = arith.constant 0 : i32
    %c0_i32_0 = arith.constant 0 : i32
    return %arg0, %arg1, %c0_i32 : i32, i32, i32
  }
}

</mosaic_0001>

<llo_original>
// kernel: tpu_custom_call.1
$region0: #{tpu_custom_call.1}
  #allocation0 [shape = 'u32[]', space=smem, size = 0x4, offset = 0x4, fixed_abs, tag = 'smem constant byte address 0x4 - core index']
  #allocation1 [shape = 'u32[144,128]{1,0:T(1,128)}', space=vmem, size = 0x12000, scoped, tag = 'internal scratch']
  #allocation2 [shape = 'f32[16,128]{1,0:T(8,128)}', space=vmem, size = 0x2000, scoped, tag = 'scratch operand']
  #allocation3 [shape = 's32[16]{0}', space=sflag, size = 0x40, scoped, tag = 'scratch operand']
  #allocation4 [shape = 's32[1]{0}', space=sflag, size = 0x4, scoped, tag = 'scoped memory for tpu_custom_call.1']
  #allocation5 [shape = 'u8[1024]{0}', space=smem, size = 0x400, scoped, tag = 'prefetched SMEM operand 0']
  #allocation6 [shape = 's32[1]{0:T(128)S(6)}', space=smem, size = 0x200, scoped, tag = 'prefetched SMEM operand 1']
  #allocation11 [shape = 's32[]', space=sflag, size = 0x4, offset = 0, fixed_abs, tag = 'sflag constant byte address 0x0 - dummy sync flag']
  #allocation12 [shape = 's32[]', space=sflag, size = 0x4, offset = 0, fixed_abs, tag = 'sflag constant byte address 0x0 - dummy sync flag']
  #allocation13 [shape = 'u32[]', space=smem, size = 0x4, offset = 0x44, fixed_abs, tag = 'smem constant byte address 0x44 - assertion arg 0']
  #allocation14 [shape = 'u32[]', space=smem, size = 0x4, offset = 0x48, fixed_abs, tag = 'smem constant byte address 0x48 - assertion arg 1']
  #allocation15 [shape = 's32[]', space=sflag, size = 0x4, offset = 0, fixed_abs, tag = 'sflag constant byte address 0x0 - dummy sync flag']
  #allocation16 [shape = 's32[]', space=sflag, size = 0x4, offset = 0, fixed_abs, tag = 'sflag constant byte address 0x0 - dummy sync flag']
  #allocation17 [shape = 's32[]', space=sflag, size = 0x4, offset = 0, fixed_abs, tag = 'sflag constant byte address 0x0 - dummy sync flag']
  #allocation18 [shape = 's32[]', space=sflag, size = 0x4, offset = 0, fixed_abs, tag = 'sflag constant byte address 0x0 - dummy sync flag']
  #allocation19 [shape = 's32[]', space=sflag, size = 0x4, offset = 0, fixed_abs, tag = 'sflag constant byte address 0x0 - dummy sync flag']
  #allocation20 [shape = 's32[]', space=sflag, size = 0x4, offset = 0, fixed_abs, tag = 'sflag constant byte address 0x0 - dummy sync flag']
  #allocation21 [shape = 's32[]', space=sflag, size = 0x4, offset = 0, fixed_abs, tag = 'sflag constant byte address 0x0 - dummy sync flag']
  #allocation22 [shape = 's32[]', space=sflag, size = 0x4, offset = 0, fixed_abs, tag = 'sflag constant byte address 0x0 - dummy sync flag']
  #allocation23 [shape = 's32[]', space=sflag, size = 0x4, offset = 0, fixed_abs, tag = 'sflag constant byte address 0x0 - dummy sync flag']
  #allocation24 [shape = 's32[]', space=sflag, size = 0x4, offset = 0, fixed_abs, tag = 'sflag constant byte address 0x0 - dummy sync flag']
  #allocation25 [shape = 's32[]', space=sflag, size = 0x4, offset = 0, fixed_abs, tag = 'sflag constant byte address 0x0 - dummy sync flag']
  #allocation26 [shape = 's32[]', space=sflag, size = 0x4, offset = 0, fixed_abs, tag = 'sflag constant byte address 0x0 - dummy sync flag']
  #allocation27 [shape = 's32[]', space=sflag, size = 0x4, offset = 0, fixed_abs, tag = 'sflag constant byte address 0x0 - dummy sync flag']
  #allocation28 [shape = 's32[]', space=sflag, size = 0x4, offset = 0, fixed_abs, tag = 'sflag constant byte address 0x0 - dummy sync flag']
  #allocation29 [shape = 's32[]', space=sflag, size = 0x4, offset = 0, fixed_abs, tag = 'sflag constant byte address 0x0 - dummy sync flag']
  #allocation30 [shape = 's32[]', space=sflag, size = 0x4, offset = 0, fixed_abs, tag = 'sflag constant byte address 0x0 - dummy sync flag']
  #allocation31 [shape = 's32[]', space=sflag, size = 0x4, offset = 0, fixed_abs, tag = 'sflag constant byte address 0x0 - dummy sync flag']
  #allocation32 [shape = 's32[]', space=sflag, size = 0x4, offset = 0, fixed_abs, tag = 'sflag constant byte address 0x0 - dummy sync flag']
  #allocation33 [shape = 's32[]', space=sflag, size = 0x4, offset = 0, fixed_abs, tag = 'sflag constant byte address 0x0 - dummy sync flag']
  #allocation34 [shape = 's32[]', space=sflag, size = 0x4, offset = 0, fixed_abs, tag = 'sflag constant byte address 0x0 - dummy sync flag']
  #allocation35 [shape = 's32[]', space=sflag, size = 0x4, offset = 0, fixed_abs, tag = 'sflag constant byte address 0x0 - dummy sync flag']
  #allocation36 [shape = 's32[]', space=sflag, size = 0x4, offset = 0, fixed_abs, tag = 'sflag constant byte address 0x0 - dummy sync flag']
  #allocation37 [shape = 's32[]', space=sflag, size = 0x4, offset = 0, fixed_abs, tag = 'sflag constant byte address 0x0 - dummy sync flag']
  #allocation38 [shape = 's32[]', space=sflag, size = 0x4, offset = 0, fixed_abs, tag = 'sflag constant byte address 0x0 - dummy sync flag']
  #allocation39 [shape = 's32[]', space=sflag, size = 0x4, offset = 0, fixed_abs, tag = 'sflag constant byte address 0x0 - dummy sync flag']
  #allocation40 [shape = 's32[]', space=sflag, size = 0x4, offset = 0, fixed_abs, tag = 'sflag constant byte address 0x0 - dummy sync flag']
  #allocation41 [shape = 's32[]', space=sflag, size = 0x4, offset = 0, fixed_abs, tag = 'sflag constant byte address 0x0 - dummy sync flag']
  #allocation42 [shape = 's32[]', space=sflag, size = 0x4, offset = 0, fixed_abs, tag = 'sflag constant byte address 0x0 - dummy sync flag']
  #allocation43 [shape = 's32[]', space=sflag, size = 0x4, offset = 0, fixed_abs, tag = 'sflag constant byte address 0x0 - dummy sync flag']
  #allocation44 [shape = 's32[]', space=sflag, size = 0x4, offset = 0, fixed_abs, tag = 'sflag constant byte address 0x0 - dummy sync flag']
  %s0 = inlined_call_operand.vmem [shape: s32[2,16], index: 0, kind: input, shape index: {}]
  %s1 = inlined_call_operand.<no memory space> [shape: s32[1], index: 1, kind: input, shape index: {}]
  %s2 = inlined_call_operand.hbm [shape: f32[11,128], index: 2, kind: input, shape index: {}]
  %s3 = inlined_call_operand.hbm [shape: f32[16,128], index: 3, kind: input, shape index: {}]
  %s4 = inlined_call_operand.hbm [shape: f32[2,16,128], index: 4, kind: output, shape index: {}]
  %s5 = sld [smem:[#allocation0]]
  $region105: #{tpu_custom_call.1} parent=0
    _
  %s7 = ssub.s32 1, %s5
  %s8 = scalar_select 0, %s7, %s5
  %s9 = sshll.u32 %s0, 4
  %s10 = int_to_ptr.vmem [resolvable:$true] %s9
  %12 = dma.vmem_to_smem %s10, 32, [#allocation5], [#allocation4]
  %13 = sst [smem:[#allocation6]] %s1
  %14 = dma.done [#allocation4], 32
  %15 = sfence
  $region1: #{tpu_custom_call.1} parent=0
    #allocation7 [shape = 'u8[8192]{0}', space=vmem, size = 0x2000, scoped, tag = 'input window, operand 3, single buffered']
    #allocation8 [shape = 's32[2]{0}', space=sflag, size = 0x8, scoped, tag = 'scoped memory for tpu_custom_call.1']
    #allocation9 [shape = 's32[2]{0}', space=sflag, size = 0x8, scoped, tag = 'scoped memory for tpu_custom_call.1']
    #allocation10 [shape = 'u8[16384]{0}', space=vmem, size = 0x4000, scoped, tag = 'output window, operand 0']
    %16 = vsyncpa [#allocation8], 0
    %17 = vsyncpa [#allocation9], 0
    %s18 = scalar_lea.sflag [#allocation9], 1
    %19 = vsyncpa %s18, 0
    loop: start=0, step=1, limit=4
    $region2: #{tpu_custom_call.1} parent=1 // loop_pre_header
      _
    $region3: #{tpu_custom_call.1} parent=1 // loop_header
      %s21 = sphi 0, %s25
      %p22 = scmp.ge.s32.totalorder %s21, 4
      %s28 = sphi 0, %s40
      %s29 = sphi 0, %s36
      %s30 = sphi 0, %s28
      %s31 = sphi 0, %s29
      %s32 = sphi 0, %s30
      %s33 = sphi 0, %s31
      %s43 = sphi 0, %s45
      %s46 = sphi 0, %s43
      %s47 = sphi 0, %s46
      %s63 = sphi 0, %s47
      %s71 = sphi 0, %s73
      %s74 = sphi 0, %s71
      %s75 = sphi 0, %s74
      %s91 = sphi 0, %s75
    $region4: #{tpu_custom_call.1} parent=1 // loop_header_branch
      %24 = sbr.rel (%p22) target = $region8
    $region5: #{tpu_custom_call.1} parent=1 // loop_body
      %s26 = ssub.s32 %s21, 1
      %s27 = ssub.s32 %s21, 2
      %s34 = sadd.s32 1, %s29
      %p35 = scmp.ge.s32.totalorder %s34, 1
      %s36 = scalar_select %p35, 0, %s34
      %s37 = sadd.s32 1, %s28
      %s38 = scalar_select %p35, %s37, %s28
      %p39 = scmp.ge.s32.totalorder %s38, 2
      %s40 = scalar_select %p39, 0, %s38
      %s41 = ssub.s32 %s29, %s36
      %p42 = scmp.eq.s32.totalorder %s41, 0
      %s44 = sadd.s32 %s43, 1
      %s45 = scalar_select %p42, %s43, %s44
      %p48 = pneg %p42
      %p49 = scmp.eq.s32.totalorder %s21, 1
      %p50 = por %p48, %p49
      %p51 = scmp.ne.s32.totalorder %s43, %s46
      %p52 = scmp.eq.s32.totalorder %s21, 0
      %p53 = por %p51, %p52
      %p54 = scmp.ne.s32.totalorder %s43, %s46
      %p55 = scmp.eq.s32.totalorder %s26, 1
      %p56 = por %p54, %p55
      %p57 = scmp.ne.s32.totalorder %s46, %s47
      %p58 = scmp.eq.s32.totalorder %s26, 0
      %p59 = por %p57, %p58
      %p60 = scmp.ne.s32.totalorder %s46, %s47
      %p61 = scmp.eq.s32.totalorder %s27, 1
      %p62 = por %p60, %p61
      %p64 = scmp.ne.s32.totalorder %s47, %s63
      %p65 = scmp.eq.s32.totalorder %s27, 0
      %p66 = por %p64, %p65
      %s67 = ssub.s32 %s28, %s40
      %s68 = ssub.s32 %s29, %s36
      %s69 = sor.u32 %s67, %s68
      %p70 = scmp.eq.s32.totalorder %s69, 0
      %s72 = sadd.s32 %s71, 1
      %s73 = scalar_select %p70, %s71, %s72
      %p76 = pneg %p70
      %p77 = scmp.eq.s32.totalorder %s21, 1
      %p78 = por %p76, %p77
      %p79 = scmp.ne.s32.totalorder %s71, %s74
      %p80 = scmp.eq.s32.totalorder %s21, 0
      %p81 = por %p79, %p80
      %p82 = scmp.ne.s32.totalorder %s71, %s74
      %p83 = scmp.eq.s32.totalorder %s26, 1
      %p84 = por %p82, %p83
      %p85 = scmp.ne.s32.totalorder %s74, %s75
      %p86 = scmp.eq.s32.totalorder %s26, 0
      %p87 = por %p85, %p86
      %p88 = scmp.ne.s32.totalorder %s74, %s75
      %p89 = scmp.eq.s32.totalorder %s27, 1
      %p90 = por %p88, %p89
      %p92 = scmp.ne.s32.totalorder %s75, %s91
      %p93 = scmp.eq.s32.totalorder %s27, 0
      %p94 = por %p92, %p93
      %p95 = scmp.le.s32.totalorder 1, %s21
      %p96 = scmp.lt.s32.totalorder %s21, 3
      %p97 = pnand %p95, %p96
      %p98 = pneg %p97
      // Predicated region
      $region9: #{tpu_custom_call.1} parent=5 // pred_check
        _
      $region10: #{tpu_custom_call.1} parent=5 // pred_check_branch
        %100 = sbr.rel (%p97) target = $region12
      $region11: #{tpu_custom_call.1} parent=5 // pred_region
        %s101 = ssub.s32 %s21, 1
        // Predicated region
        $region13: #{tpu_custom_call.1} parent=11 // pred_check
          %p102 = pneg %p59
        $region14: #{tpu_custom_call.1} parent=11 // pred_check_branch
          %104 = sbr.rel (%p102) target = $region16
        $region15: #{tpu_custom_call.1} parent=11 // pred_region
          %s105 = smul.u32 2, %s31
          %s107 = ssub.s32 256, 256
          %108 = vsyncadd [#allocation8], %s107
          %s109 = smul.addr %s105, 128
          %s110 = scalar_lea.hbm %s3, %s109
          %s111 = sshll.u32 [#allocation7], 4
          %s112 = int_to_ptr.vmem [resolvable:$true] %s111
          %117 = dma.hbm_to_vmem [thread:$0]  %s110, 256, %s112, [#allocation8], 128, 128, 8
        $region16: #{tpu_custom_call.1} parent=11 // pred_fallthru
          _
      $region12: #{tpu_custom_call.1} parent=5 // pred_fallthru
        _
      %p118 = scmp.lt.s32.totalorder %s21, 2
      // Predicated region
      $region17: #{tpu_custom_call.1} parent=5 // pred_check
        %p119 = pneg %p118
      $region18: #{tpu_custom_call.1} parent=5 // pred_check_branch
        %121 = sbr.rel (%p119) target = $region20
      $region19: #{tpu_custom_call.1} parent=5 // pred_region
        _
      $region20: #{tpu_custom_call.1} parent=5 // pred_fallthru
        _
      %p122 = scmp.le.s32.totalorder 1, %s21
      %p123 = scmp.lt.s32.totalorder %s21, 3
      %p124 = pnand %p122, %p123
      %p125 = pneg %p124
      // Predicated region
      $region21: #{tpu_custom_call.1} parent=5 // pred_check
        _
      $region22: #{tpu_custom_call.1} parent=5 // pred_check_branch
        %127 = sbr.rel (%p124) target = $region24
      $region23: #{tpu_custom_call.1} parent=5 // pred_region
        %s128 = ssub.s32 %s21, 1
        // Predicated region
        $region25: #{tpu_custom_call.1} parent=23 // pred_check
          %p129 = pneg %p59
        $region26: #{tpu_custom_call.1} parent=23 // pred_check_branch
          %131 = sbr.rel (%p129) target = $region28
        $region27: #{tpu_custom_call.1} parent=23 // pred_region
          %132 = dma.done [#allocation8], 256
        $region28: #{tpu_custom_call.1} parent=23 // pred_fallthru
          _
        %p133 = pneg %p59
        %p134 = pneg %p56
        %p135 = pneg %p87
        %p136 = pneg %p84
        %s137 = sand.u32 %s74, 1
        %s138 = scalar_lea.sflag [#allocation9], %s137
        %s139 = sand.u32 %s74, 1
        %s140 = smul.addr %s139, 16
        %s141 = scalar_lea.vmem [#allocation10], %s140
        %s142 = smul.u32 2, %s31
        %s143 = smul.u32 2, %s31
        %s144 = smul.u32 %s31, 16
        %s145 = sshra.s32 %s144, 7
        %s146 = sand.u32 %s144, 127
        %s147 = sadd.s32 %s145, %s30
        %s148 = smul.u32 %s147, 128
        %s149 = sshra.s32 %s144, 7
        %s150 = sand.u32 %s144, 127
        %s151 = sadd.s32 %s148, %s150
        %s152 = sld [smem:[#allocation5 + %s151]]
        %s153 = smul.addr %s152, 16
        %s154 = scalar_lea.hbm %s2, %s153
        // Predicated region
        $region29: #{tpu_custom_call.1} parent=23 // pred_check
          _
        $region30: #{tpu_custom_call.1} parent=23 // pred_check_branch
          %156 = sbr.rel target = $region32
        $region31: #{tpu_custom_call.1} parent=23 // pred_region
          %157 = sst [smem:[#allocation13]] [#allocation12]
          %158 = sst [smem:[#allocation14]] [#allocation11]
        $region32: #{tpu_custom_call.1} parent=23 // pred_fallthru
          _
        %160 = shalt.err (0)
        %s162 = sshll.u32 [#allocation2], 4
        %s163 = int_to_ptr.vmem [resolvable:$true] %s162
        %165 = dma.hbm_to_vmem [thread:$0]  %s154, 16, %s163, [#allocation3]
        %s166 = sadd.s32 %s144, 1
        %s167 = sshra.s32 %s166, 7
        %s168 = sand.u32 %s166, 127
        %s169 = sadd.s32 %s167, %s30
        %s170 = smul.u32 %s169, 128
        %s171 = sshra.s32 %s166, 7
        %s172 = sand.u32 %s166, 127
        %s173 = sadd.s32 %s170, %s172
        %s174 = sld [smem:[#allocation5 + %s173]]
        %s175 = smul.addr %s174, 16
        %s176 = scalar_lea.hbm %s2, %s175
        %s177 = scalar_lea.vmem [#allocation2], 1
        %s178 = scalar_lea.sflag [#allocation3], 1
        // Predicated region
        $region33: #{tpu_custom_call.1} parent=23 // pred_check
          _
        $region34: #{tpu_custom_call.1} parent=23 // pred_check_branch
          %180 = sbr.rel target = $region36
        $region35: #{tpu_custom_call.1} parent=23 // pred_region
          %181 = sst [smem:[#allocation13]] [#allocation16]
          %182 = sst [smem:[#allocation14]] [#allocation15]
        $region36: #{tpu_custom_call.1} parent=23 // pred_fallthru
          _
        %184 = shalt.err (0)
        %s186 = sshll.u32 %s177, 4
        %s187 = int_to_ptr.vmem [resolvable:$true] %s186
        %189 = dma.hbm_to_vmem [thread:$0]  %s176, 16, %s187, %s178
        %s190 = sadd.s32 %s144, 2
        %s191 = sshra.s32 %s190, 7
        %s192 = sand.u32 %s190, 127
        %s193 = sadd.s32 %s191, %s30
        %s194 = smul.u32 %s193, 128
        %s195 = sshra.s32 %s190, 7
        %s196 = sand.u32 %s190, 127
        %s197 = sadd.s32 %s194, %s196
        %s198 = sld [smem:[#allocation5 + %s197]]
        %s199 = smul.addr %s198, 16
        %s200 = scalar_lea.hbm %s2, %s199
        %s201 = scalar_lea.vmem [#allocation2], 2
        %s202 = scalar_lea.sflag [#allocation3], 2
        // Predicated region
        $region37: #{tpu_custom_call.1} parent=23 // pred_check
          _
        $region38: #{tpu_custom_call.1} parent=23 // pred_check_branch
          %204 = sbr.rel target = $region40
        $region39: #{tpu_custom_call.1} parent=23 // pred_region
          %205 = sst [smem:[#allocation13]] [#allocation18]
          %206 = sst [smem:[#allocation14]] [#allocation17]
        $region40: #{tpu_custom_call.1} parent=23 // pred_fallthru
          _
        %208 = shalt.err (0)
        %s210 = sshll.u32 %s201, 4
        %s211 = int_to_ptr.vmem [resolvable:$true] %s210
        %213 = dma.hbm_to_vmem [thread:$0]  %s200, 16, %s211, %s202
        %s214 = sadd.s32 %s144, 3
        %s215 = sshra.s32 %s214, 7
        %s216 = sand.u32 %s214, 127
        %s217 = sadd.s32 %s215, %s30
        %s218 = smul.u32 %s217, 128
        %s219 = sshra.s32 %s214, 7
        %s220 = sand.u32 %s214, 127
        %s221 = sadd.s32 %s218, %s220
        %s222 = sld [smem:[#allocation5 + %s221]]
        %s223 = smul.addr %s222, 16
        %s224 = scalar_lea.hbm %s2, %s223
        %s225 = scalar_lea.vmem [#allocation2], 3
        %s226 = scalar_lea.sflag [#allocation3], 3
        // Predicated region
        $region41: #{tpu_custom_call.1} parent=23 // pred_check
          _
        $region42: #{tpu_custom_call.1} parent=23 // pred_check_branch
          %228 = sbr.rel target = $region44
        $region43: #{tpu_custom_call.1} parent=23 // pred_region
          %229 = sst [smem:[#allocation13]] [#allocation20]
          %230 = sst [smem:[#allocation14]] [#allocation19]
        $region44: #{tpu_custom_call.1} parent=23 // pred_fallthru
          _
        %232 = shalt.err (0)
        %s234 = sshll.u32 %s225, 4
        %s235 = int_to_ptr.vmem [resolvable:$true] %s234
        %237 = dma.hbm_to_vmem [thread:$0]  %s224, 16, %s235, %s226
        %s238 = sadd.s32 %s144, 4
        %s239 = sshra.s32 %s238, 7
        %s240 = sand.u32 %s238, 127
        %s241 = sadd.s32 %s239, %s30
        %s242 = smul.u32 %s241, 128
        %s243 = sshra.s32 %s238, 7
        %s244 = sand.u32 %s238, 127
        %s245 = sadd.s32 %s242, %s244
        %s246 = sld [smem:[#allocation5 + %s245]]
        %s247 = smul.addr %s246, 16
        %s248 = scalar_lea.hbm %s2, %s247
        %s249 = scalar_lea.vmem [#allocation2], 4
        %s250 = scalar_lea.sflag [#allocation3], 4
        // Predicated region
        $region45: #{tpu_custom_call.1} parent=23 // pred_check
          _
        $region46: #{tpu_custom_call.1} parent=23 // pred_check_branch
          %252 = sbr.rel target = $region48
        $region47: #{tpu_custom_call.1} parent=23 // pred_region
          %253 = sst [smem:[#allocation13]] [#allocation22]
          %254 = sst [smem:[#allocation14]] [#allocation21]
        $region48: #{tpu_custom_call.1} parent=23 // pred_fallthru
          _
        %256 = shalt.err (0)
        %s258 = sshll.u32 %s249, 4
        %s259 = int_to_ptr.vmem [resolvable:$true] %s258
        %261 = dma.hbm_to_vmem [thread:$0]  %s248, 16, %s259, %s250
        %s262 = sadd.s32 %s144, 5
        %s263 = sshra.s32 %s262, 7
        %s264 = sand.u32 %s262, 127
        %s265 = sadd.s32 %s263, %s30
        %s266 = smul.u32 %s265, 128
        %s267 = sshra.s32 %s262, 7
        %s268 = sand.u32 %s262, 127
        %s269 = sadd.s32 %s266, %s268
        %s270 = sld [smem:[#allocation5 + %s269]]
        %s271 = smul.addr %s270, 16
        %s272 = scalar_lea.hbm %s2, %s271
        %s273 = scalar_lea.vmem [#allocation2], 5
        %s274 = scalar_lea.sflag [#allocation3], 5
        // Predicated region
        $region49: #{tpu_custom_call.1} parent=23 // pred_check
          _
        $region50: #{tpu_custom_call.1} parent=23 // pred_check_branch
          %276 = sbr.rel target = $region52
        $region51: #{tpu_custom_call.1} parent=23 // pred_region
          %277 = sst [smem:[#allocation13]] [#allocation24]
          %278 = sst [smem:[#allocation14]] [#allocation23]
        $region52: #{tpu_custom_call.1} parent=23 // pred_fallthru
          _
        %280 = shalt.err (0)
        %s282 = sshll.u32 %s273, 4
        %s283 = int_to_ptr.vmem [resolvable:$true] %s282
        %285 = dma.hbm_to_vmem [thread:$0]  %s272, 16, %s283, %s274
        %s286 = sadd.s32 %s144, 6
        %s287 = sshra.s32 %s286, 7
        %s288 = sand.u32 %s286, 127
        %s289 = sadd.s32 %s287, %s30
        %s290 = smul.u32 %s289, 128
        %s291 = sshra.s32 %s286, 7
        %s292 = sand.u32 %s286, 127
        %s293 = sadd.s32 %s290, %s292
        %s294 = sld [smem:[#allocation5 + %s293]]
        %s295 = smul.addr %s294, 16
        %s296 = scalar_lea.hbm %s2, %s295
        %s297 = scalar_lea.vmem [#allocation2], 6
        %s298 = scalar_lea.sflag [#allocation3], 6
        // Predicated region
        $region53: #{tpu_custom_call.1} parent=23 // pred_check
          _
        $region54: #{tpu_custom_call.1} parent=23 // pred_check_branch
          %300 = sbr.rel target = $region56
        $region55: #{tpu_custom_call.1} parent=23 // pred_region
          %301 = sst [smem:[#allocation13]] [#allocation26]
          %302 = sst [smem:[#allocation14]] [#allocation25]
        $region56: #{tpu_custom_call.1} parent=23 // pred_fallthru
          _
        %304 = shalt.err (0)
        %s306 = sshll.u32 %s297, 4
        %s307 = int_to_ptr.vmem [resolvable:$true] %s306
        %309 = dma.hbm_to_vmem [thread:$0]  %s296, 16, %s307, %s298
        %s310 = sadd.s32 %s144, 7
        %s311 = sshra.s32 %s310, 7
        %s312 = sand.u32 %s310, 127
        %s313 = sadd.s32 %s311, %s30
        %s314 = smul.u32 %s313, 128
        %s315 = sshra.s32 %s310, 7
        %s316 = sand.u32 %s310, 127
        %s317 = sadd.s32 %s314, %s316
        %s318 = sld [smem:[#allocation5 + %s317]]
        %s319 = smul.addr %s318, 16
        %s320 = scalar_lea.hbm %s2, %s319
        %s321 = scalar_lea.vmem [#allocation2], 7
        %s322 = scalar_lea.sflag [#allocation3], 7
        // Predicated region
        $region57: #{tpu_custom_call.1} parent=23 // pred_check
          _
        $region58: #{tpu_custom_call.1} parent=23 // pred_check_branch
          %324 = sbr.rel target = $region60
        $region59: #{tpu_custom_call.1} parent=23 // pred_region
          %325 = sst [smem:[#allocation13]] [#allocation28]
          %326 = sst [smem:[#allocation14]] [#allocation27]
        $region60: #{tpu_custom_call.1} parent=23 // pred_fallthru
          _
        %328 = shalt.err (0)
        %s330 = sshll.u32 %s321, 4
        %s331 = int_to_ptr.vmem [resolvable:$true] %s330
        %333 = dma.hbm_to_vmem [thread:$0]  %s320, 16, %s331, %s322
        %s334 = sadd.s32 %s144, 8
        %s335 = sshra.s32 %s334, 7
        %s336 = sand.u32 %s334, 127
        %s337 = sadd.s32 %s335, %s30
        %s338 = smul.u32 %s337, 128
        %s339 = sshra.s32 %s334, 7
        %s340 = sand.u32 %s334, 127
        %s341 = sadd.s32 %s338, %s340
        %s342 = sld [smem:[#allocation5 + %s341]]
        %s343 = smul.addr %s342, 16
        %s344 = scalar_lea.hbm %s2, %s343
        %s345 = scalar_lea.vmem [#allocation2], 8
        %s346 = scalar_lea.sflag [#allocation3], 8
        // Predicated region
        $region61: #{tpu_custom_call.1} parent=23 // pred_check
          _
        $region62: #{tpu_custom_call.1} parent=23 // pred_check_branch
          %348 = sbr.rel target = $region64
        $region63: #{tpu_custom_call.1} parent=23 // pred_region
          %349 = sst [smem:[#allocation13]] [#allocation30]
          %350 = sst [smem:[#allocation14]] [#allocation29]
        $region64: #{tpu_custom_call.1} parent=23 // pred_fallthru
          _
        %352 = shalt.err (0)
        %s354 = sshll.u32 %s345, 4
        %s355 = int_to_ptr.vmem [resolvable:$true] %s354
        %357 = dma.hbm_to_vmem [thread:$0]  %s344, 16, %s355, %s346
        %s358 = sadd.s32 %s144, 9
        %s359 = sshra.s32 %s358, 7
        %s360 = sand.u32 %s358, 127
        %s361 = sadd.s32 %s359, %s30
        %s362 = smul.u32 %s361, 128
        %s363 = sshra.s32 %s358, 7
        %s364 = sand.u32 %s358, 127
        %s365 = sadd.s32 %s362, %s364
        %s366 = sld [smem:[#allocation5 + %s365]]
        %s367 = smul.addr %s366, 16
        %s368 = scalar_lea.hbm %s2, %s367
        %s369 = scalar_lea.vmem [#allocation2], 9
        %s370 = scalar_lea.sflag [#allocation3], 9
        // Predicated region
        $region65: #{tpu_custom_call.1} parent=23 // pred_check
          _
        $region66: #{tpu_custom_call.1} parent=23 // pred_check_branch
          %372 = sbr.rel target = $region68
        $region67: #{tpu_custom_call.1} parent=23 // pred_region
          %373 = sst [smem:[#allocation13]] [#allocation32]
          %374 = sst [smem:[#allocation14]] [#allocation31]
        $region68: #{tpu_custom_call.1} parent=23 // pred_fallthru
          _
        %376 = shalt.err (0)
        %s378 = sshll.u32 %s369, 4
        %s379 = int_to_ptr.vmem [resolvable:$true] %s378
        %381 = dma.hbm_to_vmem [thread:$0]  %s368, 16, %s379, %s370
        %s382 = sadd.s32 %s144, 10
        %s383 = sshra.s32 %s382, 7
        %s384 = sand.u32 %s382, 127
        %s385 = sadd.s32 %s383, %s30
        %s386 = smul.u32 %s385, 128
        %s387 = sshra.s32 %s382, 7
        %s388 = sand.u32 %s382, 127
        %s389 = sadd.s32 %s386, %s388
        %s390 = sld [smem:[#allocation5 + %s389]]
        %s391 = smul.addr %s390, 16
        %s392 = scalar_lea.hbm %s2, %s391
        %s393 = scalar_lea.vmem [#allocation2], 10
        %s394 = scalar_lea.sflag [#allocation3], 10
        // Predicated region
        $region69: #{tpu_custom_call.1} parent=23 // pred_check
          _
        $region70: #{tpu_custom_call.1} parent=23 // pred_check_branch
          %396 = sbr.rel target = $region72
        $region71: #{tpu_custom_call.1} parent=23 // pred_region
          %397 = sst [smem:[#allocation13]] [#allocation34]
          %398 = sst [smem:[#allocation14]] [#allocation33]
        $region72: #{tpu_custom_call.1} parent=23 // pred_fallthru
          _
        %400 = shalt.err (0)
        %s402 = sshll.u32 %s393, 4
        %s403 = int_to_ptr.vmem [resolvable:$true] %s402
        %405 = dma.hbm_to_vmem [thread:$0]  %s392, 16, %s403, %s394
        %s406 = sadd.s32 %s144, 11
        %s407 = sshra.s32 %s406, 7
        %s408 = sand.u32 %s406, 127
        %s409 = sadd.s32 %s407, %s30
        %s410 = smul.u32 %s409, 128
        %s411 = sshra.s32 %s406, 7
        %s412 = sand.u32 %s406, 127
        %s413 = sadd.s32 %s410, %s412
        %s414 = sld [smem:[#allocation5 + %s413]]
        %s415 = smul.addr %s414, 16
        %s416 = scalar_lea.hbm %s2, %s415
        %s417 = scalar_lea.vmem [#allocation2], 11
        %s418 = scalar_lea.sflag [#allocation3], 11
        // Predicated region
        $region73: #{tpu_custom_call.1} parent=23 // pred_check
          _
        $region74: #{tpu_custom_call.1} parent=23 // pred_check_branch
          %420 = sbr.rel target = $region76
        $region75: #{tpu_custom_call.1} parent=23 // pred_region
          %421 = sst [smem:[#allocation13]] [#allocation36]
          %422 = sst [smem:[#allocation14]] [#allocation35]
        $region76: #{tpu_custom_call.1} parent=23 // pred_fallthru
          _
        %424 = shalt.err (0)
        %s426 = sshll.u32 %s417, 4
        %s427 = int_to_ptr.vmem [resolvable:$true] %s426
        %429 = dma.hbm_to_vmem [thread:$0]  %s416, 16, %s427, %s418
        %s430 = sadd.s32 %s144, 12
        %s431 = sshra.s32 %s430, 7
        %s432 = sand.u32 %s430, 127
        %s433 = sadd.s32 %s431, %s30
        %s434 = smul.u32 %s433, 128
        %s435 = sshra.s32 %s430, 7
        %s436 = sand.u32 %s430, 127
        %s437 = sadd.s32 %s434, %s436
        %s438 = sld [smem:[#allocation5 + %s437]]
        %s439 = smul.addr %s438, 16
        %s440 = scalar_lea.hbm %s2, %s439
        %s441 = scalar_lea.vmem [#allocation2], 12
        %s442 = scalar_lea.sflag [#allocation3], 12
        // Predicated region
        $region77: #{tpu_custom_call.1} parent=23 // pred_check
          _
        $region78: #{tpu_custom_call.1} parent=23 // pred_check_branch
          %444 = sbr.rel target = $region80
        $region79: #{tpu_custom_call.1} parent=23 // pred_region
          %445 = sst [smem:[#allocation13]] [#allocation38]
          %446 = sst [smem:[#allocation14]] [#allocation37]
        $region80: #{tpu_custom_call.1} parent=23 // pred_fallthru
          _
        %448 = shalt.err (0)
        %s450 = sshll.u32 %s441, 4
        %s451 = int_to_ptr.vmem [resolvable:$true] %s450
        %453 = dma.hbm_to_vmem [thread:$0]  %s440, 16, %s451, %s442
        %s454 = sadd.s32 %s144, 13
        %s455 = sshra.s32 %s454, 7
        %s456 = sand.u32 %s454, 127
        %s457 = sadd.s32 %s455, %s30
        %s458 = smul.u32 %s457, 128
        %s459 = sshra.s32 %s454, 7
        %s460 = sand.u32 %s454, 127
        %s461 = sadd.s32 %s458, %s460
        %s462 = sld [smem:[#allocation5 + %s461]]
        %s463 = smul.addr %s462, 16
        %s464 = scalar_lea.hbm %s2, %s463
        %s465 = scalar_lea.vmem [#allocation2], 13
        %s466 = scalar_lea.sflag [#allocation3], 13
        // Predicated region
        $region81: #{tpu_custom_call.1} parent=23 // pred_check
          _
        $region82: #{tpu_custom_call.1} parent=23 // pred_check_branch
          %468 = sbr.rel target = $region84
        $region83: #{tpu_custom_call.1} parent=23 // pred_region
          %469 = sst [smem:[#allocation13]] [#allocation40]
          %470 = sst [smem:[#allocation14]] [#allocation39]
        $region84: #{tpu_custom_call.1} parent=23 // pred_fallthru
          _
        %472 = shalt.err (0)
        %s474 = sshll.u32 %s465, 4
        %s475 = int_to_ptr.vmem [resolvable:$true] %s474
        %477 = dma.hbm_to_vmem [thread:$0]  %s464, 16, %s475, %s466
        %s478 = sadd.s32 %s144, 14
        %s479 = sshra.s32 %s478, 7
        %s480 = sand.u32 %s478, 127
        %s481 = sadd.s32 %s479, %s30
        %s482 = smul.u32 %s481, 128
        %s483 = sshra.s32 %s478, 7
        %s484 = sand.u32 %s478, 127
        %s485 = sadd.s32 %s482, %s484
        %s486 = sld [smem:[#allocation5 + %s485]]
        %s487 = smul.addr %s486, 16
        %s488 = scalar_lea.hbm %s2, %s487
        %s489 = scalar_lea.vmem [#allocation2], 14
        %s490 = scalar_lea.sflag [#allocation3], 14
        // Predicated region
        $region85: #{tpu_custom_call.1} parent=23 // pred_check
          _
        $region86: #{tpu_custom_call.1} parent=23 // pred_check_branch
          %492 = sbr.rel target = $region88
        $region87: #{tpu_custom_call.1} parent=23 // pred_region
          %493 = sst [smem:[#allocation13]] [#allocation42]
          %494 = sst [smem:[#allocation14]] [#allocation41]
        $region88: #{tpu_custom_call.1} parent=23 // pred_fallthru
          _
        %496 = shalt.err (0)
        %s498 = sshll.u32 %s489, 4
        %s499 = int_to_ptr.vmem [resolvable:$true] %s498
        %501 = dma.hbm_to_vmem [thread:$0]  %s488, 16, %s499, %s490
        %s502 = sadd.s32 %s144, 15
        %s503 = sshra.s32 %s502, 7
        %s504 = sand.u32 %s502, 127
        %s505 = sadd.s32 %s503, %s30
        %s506 = smul.u32 %s505, 128
        %s507 = sshra.s32 %s502, 7
        %s508 = sand.u32 %s502, 127
        %s509 = sadd.s32 %s506, %s508
        %s510 = sld [smem:[#allocation5 + %s509]]
        %s511 = smul.addr %s510, 16
        %s512 = scalar_lea.hbm %s2, %s511
        %s513 = scalar_lea.vmem [#allocation2], 15
        %s514 = scalar_lea.sflag [#allocation3], 15
        // Predicated region
        $region89: #{tpu_custom_call.1} parent=23 // pred_check
          _
        $region90: #{tpu_custom_call.1} parent=23 // pred_check_branch
          %516 = sbr.rel target = $region92
        $region91: #{tpu_custom_call.1} parent=23 // pred_region
          %517 = sst [smem:[#allocation13]] [#allocation44]
          %518 = sst [smem:[#allocation14]] [#allocation43]
        $region92: #{tpu_custom_call.1} parent=23 // pred_fallthru
          _
        %520 = shalt.err (0)
        %s522 = sshll.u32 %s513, 4
        %s523 = int_to_ptr.vmem [resolvable:$true] %s522
        %525 = dma.hbm_to_vmem [thread:$0]  %s512, 16, %s523, %s514
        %s526 = smul.u32 1, 1
        %s527 = sshll.u32 %s526, 4
        %528 = dma.done [#allocation3], %s527
        %s529 = sshll.u32 %s526, 4
        %530 = dma.done %s178, %s529
        %s531 = sshll.u32 %s526, 4
        %532 = dma.done %s202, %s531
        %s533 = sshll.u32 %s526, 4
        %534 = dma.done %s226, %s533
        %s535 = sshll.u32 %s526, 4
        %536 = dma.done %s250, %s535
        %s537 = sshll.u32 %s526, 4
        %538 = dma.done %s274, %s537
        %s539 = sshll.u32 %s526, 4
        %540 = dma.done %s298, %s539
        %s541 = sshll.u32 %s526, 4
        %542 = dma.done %s322, %s541
        %s543 = sshll.u32 %s526, 4
        %544 = dma.done %s346, %s543
        %s545 = sshll.u32 %s526, 4
        %546 = dma.done %s370, %s545
        %s547 = sshll.u32 %s526, 4
        %548 = dma.done %s394, %s547
        %s549 = sshll.u32 %s526, 4
        %550 = dma.done %s418, %s549
        %s551 = sshll.u32 %s526, 4
        %552 = dma.done %s442, %s551
        %s553 = sshll.u32 %s526, 4
        %554 = dma.done %s466, %s553
        %s555 = sshll.u32 %s526, 4
        %556 = dma.done %s490, %s555
        %s557 = sshll.u32 %s526, 4
        %558 = dma.done %s514, %s557
        %v559 = vld [vmem:[#allocation2] sm:$0xff]
        %v560 = vld [vmem:[#allocation2 + $0x8] sm:$0xff]
        %v561 = vld [vmem:[#allocation7] sm:$0xff]
        %v562 = vld [vmem:[#allocation7 + $0x8] sm:$0xff]
        %v563 = vadd.f32 %v559, %v561
        %v564 = vadd.f32 %v560, %v562
        %565 = vst [vmem:[%s141] sm:$0xff] %v563
        %566 = vst [vmem:[%s141 + $0x8] sm:$0xff] %v564
        %s567 = sand.u32 %s74, 1
        %s568 = scalar_lea.sflag [#allocation9], %s567
        %s569 = sand.u32 %s74, 1
        %s570 = smul.addr %s569, 16
        %s571 = scalar_lea.vmem [#allocation10], %s570
        // Predicated region
        $region93: #{tpu_custom_call.1} parent=23 // pred_check
          %p572 = pneg %p84
        $region94: #{tpu_custom_call.1} parent=23 // pred_check_branch
          %574 = sbr.rel (%p572) target = $region96
        $region95: #{tpu_custom_call.1} parent=23 // pred_region
          %s575 = smul.u32 2, %s31
          %s577 = ssub.s32 256, 256
          %578 = vsyncadd %s568, %s577
          %s579 = smul.addr %s30, 2
          %s580 = sadd.s32 %s575, %s579
          %s581 = smul.addr %s580, 128
          %s582 = scalar_lea.hbm %s4, %s581
          %s583 = sshll.u32 %s571, 4
          %s584 = int_to_ptr.vmem [resolvable:$true] %s583
          %589 = dma.vmem_to_hbm [thread:$0]  %s584, 256, %s582, %s568, 128, 128, 8
        $region96: #{tpu_custom_call.1} parent=23 // pred_fallthru
          _
      $region24: #{tpu_custom_call.1} parent=5 // pred_fallthru
        _
      %p590 = scmp.le.s32.totalorder 2, %s21
      // Predicated region
      $region97: #{tpu_custom_call.1} parent=5 // pred_check
        %p591 = pneg %p590
      $region98: #{tpu_custom_call.1} parent=5 // pred_check_branch
        %593 = sbr.rel (%p591) target = $region100
      $region99: #{tpu_custom_call.1} parent=5 // pred_region
        %s594 = ssub.s32 %s21, 2
        // Predicated region
        $region101: #{tpu_custom_call.1} parent=99 // pred_check
          %p595 = pneg %p90
        $region102: #{tpu_custom_call.1} parent=99 // pred_check_branch
          %597 = sbr.rel (%p595) target = $region104
        $region103: #{tpu_custom_call.1} parent=99 // pred_region
          %s598 = sand.u32 %s75, 1
          %s599 = scalar_lea.sflag [#allocation9], %s598
          %s600 = sand.u32 %s75, 1
          %s601 = smul.addr %s600, 16
          %s602 = scalar_lea.vmem [#allocation10], %s601
          %603 = dma.done %s599, 256
        $region104: #{tpu_custom_call.1} parent=99 // pred_fallthru
          _
      $region100: #{tpu_custom_call.1} parent=5 // pred_fallthru
        _
    $region6: #{tpu_custom_call.1} parent=1 // loop_footer
      %s25 = sadd.s32 1, %s21
    $region7: #{tpu_custom_call.1} parent=1 // loop_footer_branch
      %20 = sbr.rel target = $region3
    $region8: #{tpu_custom_call.1} parent=1 // loop_exit
      _
    %604 = vsyncpa [#allocation8], 1
    %s605 = scalar_lea.sflag [#allocation8], 1
    %606 = vsyncpa %s605, 1
    %607 = vsyncpa [#allocation9], 1
    %s608 = scalar_lea.sflag [#allocation9], 1
    %609 = vsyncpa %s608, 1
  %610 = vsyncmov [#allocation3]
  %s611 = vpop.sfrf %610
  %p612 = scmp.eq.s32.totalorder %s611, 0
  %p613 = pneg %p612
  %615 = shalt.err (%p613)
  %s616 = scalar_lea.sflag [#allocation3], 1
  %617 = vsyncmov %s616
  %s618 = vpop.sfrf %617
  %p619 = scmp.eq.s32.totalorder %s618, 0
  %p620 = pneg %p619
  %622 = shalt.err (%p620)
  %s623 = scalar_lea.sflag [#allocation3], 2
  %624 = vsyncmov %s623
  %s625 = vpop.sfrf %624
  %p626 = scmp.eq.s32.totalorder %s625, 0
  %p627 = pneg %p626
  %629 = shalt.err (%p627)
  %s630 = scalar_lea.sflag [#allocation3], 3
  %631 = vsyncmov %s630
  %s632 = vpop.sfrf %631
  %p633 = scmp.eq.s32.totalorder %s632, 0
  %p634 = pneg %p633
  %636 = shalt.err (%p634)
  %s637 = scalar_lea.sflag [#allocation3], 4
  %638 = vsyncmov %s637
  %s639 = vpop.sfrf %638
  %p640 = scmp.eq.s32.totalorder %s639, 0
  %p641 = pneg %p640
  %643 = shalt.err (%p641)
  %s644 = scalar_lea.sflag [#allocation3], 5
  %645 = vsyncmov %s644
  %s646 = vpop.sfrf %645
  %p647 = scmp.eq.s32.totalorder %s646, 0
  %p648 = pneg %p647
  %650 = shalt.err (%p648)
  %s651 = scalar_lea.sflag [#allocation3], 6
  %652 = vsyncmov %s651
  %s653 = vpop.sfrf %652
  %p654 = scmp.eq.s32.totalorder %s653, 0
  %p655 = pneg %p654
  %657 = shalt.err (%p655)
  %s658 = scalar_lea.sflag [#allocation3], 7
  %659 = vsyncmov %s658
  %s660 = vpop.sfrf %659
  %p661 = scmp.eq.s32.totalorder %s660, 0
  %p662 = pneg %p661
  %664 = shalt.err (%p662)
  %s665 = scalar_lea.sflag [#allocation3], 8
  %666 = vsyncmov %s665
  %s667 = vpop.sfrf %666
  %p668 = scmp.eq.s32.totalorder %s667, 0
  %p669 = pneg %p668
  %671 = shalt.err (%p669)
  %s672 = scalar_lea.sflag [#allocation3], 9
  %673 = vsyncmov %s672
  %s674 = vpop.sfrf %673
  %p675 = scmp.eq.s32.totalorder %s674, 0
  %p676 = pneg %p675
  %678 = shalt.err (%p676)
  %s679 = scalar_lea.sflag [#allocation3], 10
  %680 = vsyncmov %s679
  %s681 = vpop.sfrf %680
  %p682 = scmp.eq.s32.totalorder %s681, 0
  %p683 = pneg %p682
  %685 = shalt.err (%p683)
  %s686 = scalar_lea.sflag [#allocation3], 11
  %687 = vsyncmov %s686
  %s688 = vpop.sfrf %687
  %p689 = scmp.eq.s32.totalorder %s688, 0
  %p690 = pneg %p689
  %692 = shalt.err (%p690)
  %s693 = scalar_lea.sflag [#allocation3], 12
  %694 = vsyncmov %s693
  %s695 = vpop.sfrf %694
  %p696 = scmp.eq.s32.totalorder %s695, 0
  %p697 = pneg %p696
  %699 = shalt.err (%p697)
  %s700 = scalar_lea.sflag [#allocation3], 13
  %701 = vsyncmov %s700
  %s702 = vpop.sfrf %701
  %p703 = scmp.eq.s32.totalorder %s702, 0
  %p704 = pneg %p703
  %706 = shalt.err (%p704)
  %s707 = scalar_lea.sflag [#allocation3], 14
  %708 = vsyncmov %s707
  %s709 = vpop.sfrf %708
  %p710 = scmp.eq.s32.totalorder %s709, 0
  %p711 = pneg %p710
  %713 = shalt.err (%p711)
  %s714 = scalar_lea.sflag [#allocation3], 15
  %715 = vsyncmov %s714
  %s716 = vpop.sfrf %715
  %p717 = scmp.eq.s32.totalorder %s716, 0
  %p718 = pneg %p717
  %720 = shalt.err (%p718)

</llo_original>
